<compile_context>
chip_gen: v6e
topology: v6e:2x2x1
jax: 0.10.0
libtpu: 0.0.40
codegen_flags: <defaults>
</compile_context>

<pallas_src>
import functools
import math

import jax
import jax.numpy as jnp
from jax.experimental import pallas as pl
from jax.experimental.pallas import tpu as pltpu

F32 = jnp.float32


def _sigmoid(x):
    # numerically stable logistic from a single exp (no inf intermediates; Mosaic-friendly)
    e = jnp.exp(-jnp.abs(x))
    return jnp.where(x >= 0, 1.0 / (1.0 + e), e / (1.0 + e))


def _softplus(x):
    # stable softplus: max(x, 0) + log(1 + exp(-|x|))  (matches F.softplus)
    return jnp.maximum(x, 0.0) + jnp.log(1.0 + jnp.exp(-jnp.abs(x)))


# ----------------------------------------------------------------------------
# Hardware-aware helpers.
# ----------------------------------------------------------------------------
def _vmem_budget_bytes():
    """~75% of physical VMEM: ~96 MiB on v5e/v6e, ~48 MiB on v7x."""
    cap = 128 * 1024 * 1024
    try:
        cap = int(getattr(pltpu.get_tpu_info(), "vmem_capacity_bytes", cap))
    except Exception:
        pass
    return (cap * 3) // 4


def _min_grid_steps():
    """v7x has 2 TensorCores sharing the 'parallel' grid axis; keep >= 2 batch tiles there."""
    try:
        kind = jax.devices()[0].device_kind.lower()
    except Exception:
        return 1
    return 2 if "v7" in kind else 1


@functools.lru_cache(maxsize=None)
def _single_buffer_supported():
    """Probe whether pipeline_mode=pl.Buffered(1) (single-buffered invariant inputs) lowers."""
    try:
        def _k(x_ref, o_ref):
            o_ref[...] = x_ref[...]
        out = pl.pallas_call(
            _k, out_shape=jax.ShapeDtypeStruct((8, 128), F32), grid=(1,),
            in_specs=[pl.BlockSpec((8, 128), lambda i: (0, 0), pipeline_mode=pl.Buffered(1))],
            out_specs=pl.BlockSpec((8, 128), lambda i: (0, 0)),
        )(jnp.zeros((8, 128), F32))
        jax.block_until_ready(out)
        return True
    except Exception:
        return False


def _largest_divisor_leq(n, cap):
    cap = max(1, min(n, cap))
    while n % cap:
        cap -= 1
    return cap


def _pick_tb(B, L, min_steps, target_rows=256):
    """Batch tile feeding ~target_rows rows to the MXU, but >= min_steps grid steps (v7x)."""
    tb = _largest_divisor_leq(B, max(1, target_rows // max(L, 1)))
    if min_steps > 1 and B >= min_steps:
        tb = min(tb, _largest_divisor_leq(B, max(1, B // min_steps)))
    return tb


def _pick_lc(L, cap=64):
    """Scan chunk length: a multiple of 8 (aligned tiles) that divides L."""
    lc = 1
    for c in (8, 16, 32, 64):
        if c <= cap and L % c == 0:
            lc = c
    if lc == 1:
        lc = _largest_divisor_leq(L, cap)
    return lc


def _vmem_estimate(tb, lc, L, D, ED, N, dtr, K, wbuf, wbytes):
    f32 = 4
    w_big = (D * 2 * ED + ED * (dtr + 2 * N) + dtr * ED + ED * D) * wbytes
    w_small = (D + (K + 3) * ED + N * ED) * f32
    io = 2 * 2 * tb * L * D * f32                         # x/out blocks, double-buffered
    scr = (3 * tb * L * ED + 2 * tb * L * N
           + tb * lc * N * ED + tb * N * ED) * f32        # delta/dx/ys + B/C + dA chunk + h
    vals = (5 * tb * L * ED + 2 * tb * L * D) * f32       # headroom for traced intermediates
    return wbuf * (w_big + w_small) + io + scr + vals


# ----------------------------------------------------------------------------
# Fused Mamba layer kernel: RMSNorm + in_proj + causal depthwise conv + SiLU
#                           + chunked selective scan + gating + out_proj + residual.
# Grid iterates over batch tiles of TB sequences; each program processes (TB, L, D).
# ----------------------------------------------------------------------------
def _mamba_layer_kernel(x_ref, rmsw_ref, win_ref, convw_ref, convb_ref,
                        wxp_ref, wdt_ref, bdt_ref, negA_ref, dvec_ref, wout_ref,
                        out_ref,
                        dl_scr, dx_scr, bm_scr, cm_scr, dA_scr, ys_scr, h_scr,
                        *, emit_mean, lc):
    TB, L, D = x_ref.shape
    ED = wout_ref.shape[0]
    N = negA_ref.shape[0]
    K = convw_ref.shape[0]
    dtr = wxp_ref.shape[1] - 2 * N
    mxu = win_ref.dtype                    # bf16 MXU operands (pre-cast weights), f32 accumulate

    x = x_ref[...]                                                    # (TB, L, D) f32

    # ---- RMSNorm ----
    var = jnp.mean(x * x, axis=-1, keepdims=True)
    xn = x * jax.lax.rsqrt(var + 1e-5) * rmsw_ref[...][None]

    # ---- in_proj: fused x/z branches, one (TB*L, D) @ (D, 2*ED) MXU matmul ----
    xz = jnp.dot(xn.reshape(TB * L, D).astype(mxu), win_ref[...],
                 preferred_element_type=F32)                          # (TB*L, 2ED) f32
    xi3 = xz[:, :ED].reshape(TB, L, ED)
    z3 = xz[:, ED:].reshape(TB, L, ED)

    # ---- depthwise causal conv1d: K static shifted slices (VPU only) + SiLU ----
    # (pltpu.roll + mask would avoid the zero-concat copies; minor, left as-is.)
    conv_w = convw_ref[...]                                           # (K, ED)
    xpad = jnp.concatenate([jnp.zeros((TB, K - 1, ED), F32), xi3], axis=1)
    acc = convb_ref[...][None] + conv_w[0:1, :][None] * xpad[:, 0:L, :]
    for k in range(1, K):                                             # K is tiny & static
        acc = acc + conv_w[k:k + 1, :][None] * xpad[:, k:k + L, :]
    xs3 = acc * _sigmoid(acc)                                         # (TB, L, ED)

    # ---- x_proj (delta_r | B | C fused in one lane-dense matmul) + dt_proj ----
    dbc = jnp.dot(xs3.reshape(TB * L, ED).astype(mxu), wxp_ref[...],
                  preferred_element_type=F32)                         # (TB*L, dtr+2N)
    dr = dbc[:, :dtr]
    Bm = dbc[:, dtr:dtr + N]
    Cm = dbc[:, dtr + N:dtr + 2 * N]
    d = jnp.dot(dr.astype(mxu), wdt_ref[...], preferred_element_type=F32) + bdt_ref[...]
    delta = _softplus(d).reshape(TB, L, ED)                           # (TB, L, ED)

    # ---- scan inputs live in small lane-dense scratches (no (TB,L,N,ED) materialization) ----
    dl_scr[...] = delta
    dx_scr[...] = delta * xs3
    bm_scr[...] = Bm.reshape(TB, L, N)
    cm_scr[...] = Cm.reshape(TB, L, N)
    h_scr[...] = jnp.zeros_like(h_scr)

    negA = negA_ref[...]                                              # (N, ED) = -exp(A_log)
    n_chunks = L // lc

    # ---- selective scan, chunked over L:
    #   per chunk: batch-compute exp(delta*A) into a (TB, lc, N, ED) scratch (EUP off the per-step
    #   path, VMEM bounded); the lc inner steps are a static unroll so h stays in vregs; bx_t is
    #   formed in-registers; y is assembled per chunk and stored as one (8,128)-aligned tile.
    def chunk(c, carry):
        off = pl.multiple_of(c * lc, lc)
        d_chunk = dl_scr[:, pl.ds(off, lc), :]                        # (TB, lc, ED)
        dA_scr[...] = jnp.exp(d_chunk[:, :, None, :] * negA[None, None])
        dx_chunk = dx_scr[:, pl.ds(off, lc), :]                       # (TB, lc, ED)
        b_chunk = bm_scr[:, pl.ds(off, lc), :]                        # (TB, lc, N)
        c_chunk = cm_scr[:, pl.ds(off, lc), :]                        # (TB, lc, N)
        h = h_scr[...]                                                # (TB, N, ED)
        ys = []
        for i in range(lc):                                           # static unroll
            dA_t = dA_scr[:, pl.ds(i, 1), :, :].reshape(TB, N, ED)
            b_t = b_chunk[:, i, :]                                    # (TB, N)
            c_t = c_chunk[:, i, :]                                    # (TB, N)
            dx_t = dx_chunk[:, i, :]                                  # (TB, ED)
            h = dA_t * h + b_t[:, :, None] * dx_t[:, None, :]         # (TB, N, ED)
            ys.append(jnp.sum(h * c_t[:, :, None], axis=1))           # (TB, ED)
        h_scr[...] = h
        ys_scr[:, pl.ds(off, lc), :] = jnp.stack(ys, axis=1)          # aligned chunk store
        return carry

    jax.lax.fori_loop(0, n_chunks, chunk, 0)

    # ---- skip term, SiLU(z) gate, out_proj, residual ----
    y = ys_scr[...] + dvec_ref[...][None] * xs3                       # (TB, L, ED)
    y = y * (z3 * _sigmoid(z3))
    out = jnp.dot(y.reshape(TB * L, ED).astype(mxu), wout_ref[...],
                  preferred_element_type=F32).reshape(TB, L, D)
    res = x + out
    if emit_mean:
        out_ref[...] = jnp.mean(res, axis=1, keepdims=True)           # (TB, 1, D): fused mean
    else:
        out_ref[...] = res


def mamba_layer(x, p, *, emit_mean=False):
    B, L, D = x.shape
    N, ED = p["negA"].shape
    dtr = p["w_dt"].shape[0]
    K = p["conv_w"].shape[0]

    single_buf = _single_buffer_supported()
    wbuf = 1 if single_buf else 2
    wbytes = jnp.dtype(p["w_in"].dtype).itemsize

    budget = _vmem_budget_bytes()
    tb = _pick_tb(B, L, _min_grid_steps())
    lc = _pick_lc(L)
    # Shrink the scan chunk, then the batch tile, until the estimate fits the budget.
    while (_vmem_estimate(tb, lc, L, D, ED, N, dtr, K, wbuf, wbytes) > 0.7 * budget
           and lc > 8 and lc % 2 == 0):
        lc //= 2
    while _vmem_estimate(tb, lc, L, D, ED, N, dtr, K, wbuf, wbytes) > 0.7 * budget and tb > 1:
        tb = _largest_divisor_leq(B, tb - 1)
    # TODO(synk): if a single batch tile still exceeds the budget (very large D*L), additionally
    # tile the in/out projections over ED with an extra grid axis.

    weights = [p["rms_w"], p["w_in"], p["conv_w"], p["conv_b"], p["w_xproj"],
               p["w_dt"], p["b_dt"], p["negA"], p["D"], p["w_out"]]

    def full(a):
        idx = (lambda b, _n=a.ndim: (0,) * _n)            # bind ndim at definition time
        if single_buf:
            # grid-invariant weights: no double-buffer duplication in VMEM
            return pl.BlockSpec(a.shape, idx, pipeline_mode=pl.Buffered(1))
        return pl.BlockSpec(a.shape, idx)

    out_L = 1 if emit_mean else L
    return pl.pallas_call(
        functools.partial(_mamba_layer_kernel, emit_mean=emit_mean, lc=lc),
        out_shape=jax.ShapeDtypeStruct((B, out_L, D), F32),
        grid=(B // tb,),
        in_specs=[pl.BlockSpec((tb, L, D), lambda b: (b, 0, 0))] + [full(w) for w in weights],
        out_specs=pl.BlockSpec((tb, out_L, D), lambda b: (b, 0, 0)),
        scratch_shapes=[pltpu.VMEM((tb, L, ED), F32),      # delta
                        pltpu.VMEM((tb, L, ED), F32),      # delta * x
                        pltpu.VMEM((tb, L, N), F32),       # B  (lane-dense, no trailing 1)
                        pltpu.VMEM((tb, L, N), F32),       # C  (lane-dense)
                        pltpu.VMEM((tb, lc, N, ED), F32),  # exp(delta*A), one chunk only
                        pltpu.VMEM((tb, L, ED), F32),      # y outputs
                        pltpu.VMEM((tb, N, ED), F32)],     # recurrent state h (in place)
        compiler_params=pltpu.CompilerParams(
            dimension_semantics=("parallel",),             # independent batch tiles (v7x: 2 TCs)
            vmem_limit_bytes=budget),
    )(x, *weights)


# ----------------------------------------------------------------------------
# Classifier head: single program, one (B, D) @ (D, C) matmul + sigmoid.
# (The per-sequence mean is produced by the last mamba layer's epilogue.)
# ----------------------------------------------------------------------------
def _head_kernel(m_ref, w_ref, b_ref, o_ref):
    logits = jnp.dot(m_ref[...].astype(w_ref.dtype), w_ref[...],
                     preferred_element_type=F32) + b_ref[...]
    o_ref[...] = _sigmoid(logits)


def classifier_head(means, w, b):
    B, D = means.shape
    C = w.shape[1]
    return pl.pallas_call(
        _head_kernel,
        out_shape=jax.ShapeDtypeStruct((B, C), F32),
        grid=(1,),
        in_specs=[pl.BlockSpec((B, D), lambda i: (0, 0)),
                  pl.BlockSpec((D, C), lambda i: (0, 0)),
                  pl.BlockSpec((1, C), lambda i: (0, 0))],
        out_specs=pl.BlockSpec((B, C), lambda i: (0, 0)),
        compiler_params=pltpu.CompilerParams(dimension_semantics=("arbitrary",)),
    )(means, w, b)


def mamba_classifier_forward(x, packed):
    layers = packed["layers"]
    for p in layers[:-1]:
        x = mamba_layer(x, p)
    means = mamba_layer(x, layers[-1], emit_mean=True)       # (B, 1, D)
    means = means.reshape(x.shape[0], x.shape[2])
    return classifier_head(means, packed["cls_w"], packed["cls_b"])


# ----------------------------------------------------------------------------
# Deterministic parameter init (synthetic weights; shapes follow the module) + packing.
# ----------------------------------------------------------------------------
def init_params(key, d_model, n_layers=2, d_state=16, d_conv=4, num_classes=1):
    ED = 2 * d_model                       # expand_factor = 2
    dtr = math.ceil(d_model / 16)          # dt_rank = 'auto'

    def rnd(k, shape, fan_in):
        return (jax.random.normal(k, shape, F32) / jnp.sqrt(jnp.asarray(fan_in, F32))).astype(F32)

    layers = []
    for _ in range(n_layers):
        key, *ks = jax.random.split(key, 10)
        layers.append({
            "rms_w": jnp.ones((1, d_model), F32),
            "w_in_x": rnd(ks[0], (d_model, ED), d_model),
            "w_in_z": rnd(ks[1], (d_model, ED), d_model),
            "conv_w": rnd(ks[2], (d_conv, ED), d_conv),
            "conv_b": 0.1 * rnd(ks[3], (1, ED), 1.0),
            "w_delta": rnd(ks[4], (ED, dtr), ED),
            "w_B": rnd(ks[5], (ED, d_state), ED),
            "w_C": rnd(ks[6], (ED, d_state), ED),
            "w_dt": rnd(ks[7], (dtr, ED), dtr),
            "b_dt": jnp.full((1, ED), -1.0, F32),
            "A_logT": jnp.broadcast_to(
                jnp.log(jnp.arange(1, d_state + 1, dtype=F32))[:, None], (d_state, ED)).astype(F32),
            "D": jnp.ones((1, ED), F32),
            "w_out": rnd(ks[8], (ED, d_model), ED),
        })
    key, kw = jax.random.split(key)
    return {"layers": layers,
            "cls_w": rnd(kw, (d_model, num_classes), d_model),
            "cls_b": jnp.zeros((1, num_classes), F32)}


def pack_params(params, mxu_dtype=jnp.bfloat16):
    """Fuse + pre-cast weights once, outside the kernels (also hoists A = -exp(A_log))."""
    layers = []
    for p in params["layers"]:
        layers.append({
            "rms_w": p["rms_w"],
            "w_in": jnp.concatenate([p["w_in_x"], p["w_in_z"]], axis=1).astype(mxu_dtype),
            "conv_w": p["conv_w"],
            "conv_b": p["conv_b"],
            "w_xproj": jnp.concatenate([p["w_delta"], p["w_B"], p["w_C"]], axis=1).astype(mxu_dtype),
            "w_dt": p["w_dt"].astype(mxu_dtype),
            "b_dt": p["b_dt"],
            "negA": -jnp.exp(p["A_logT"]),
            "D": p["D"],
            "w_out": p["w_out"].astype(mxu_dtype),
        })
    return {"layers": layers,
            "cls_w": params["cls_w"].astype(mxu_dtype),
            "cls_b": params["cls_b"]}


# ----------------------------------------------------------------------------
# Pure-JAX reference (same math, same MXU-dtype casts) for correctness checks.
# ----------------------------------------------------------------------------
def _mm(a, w):
    return jnp.dot(a.astype(w.dtype), w, preferred_element_type=F32)


def _ref_layer(x, p):
    B, L, D = x.shape
    K = p["conv_w"].shape[0]
    N, ED = p["negA"].shape
    dtr = p["w_dt"].shape[0]

    xn = x * jax.lax.rsqrt(jnp.mean(x * x, axis=-1, keepdims=True) + 1e-5) * p["rms_w"]
    xz = _mm(xn.reshape(B * L, D), p["w_in"]).reshape(B, L, 2 * ED)
    xi, z = xz[..., :ED], xz[..., ED:]

    xpad = jnp.pad(xi, ((0, 0), (K - 1, 0), (0, 0)))
    acc = jnp.zeros_like(xi) + p["conv_b"]
    for k in range(K):
        acc = acc + p["conv_w"][k] * xpad[:, k:k + L, :]
    xs = acc * _sigmoid(acc)

    dbc = _mm(xs.reshape(B * L, ED), p["w_xproj"])
    dr, Bm, Cm = dbc[:, :dtr], dbc[:, dtr:dtr + N], dbc[:, dtr + N:]
    delta = _softplus(_mm(dr, p["w_dt"]) + p["b_dt"]).reshape(B, L, ED)

    dA = jnp.exp(delta[:, :, None, :] * p["negA"][None, None])
    BX = Bm.reshape(B, L, N)[..., None] * (delta * xs)[:, :, None, :]
    Cm = Cm.reshape(B, L, N)
    h = jnp.zeros((B, N, ED), F32)
    ys = []
    for t in range(L):
        h = dA[:, t] * h + BX[:, t]
        ys.append(jnp.sum(h * Cm[:, t, :, None], axis=1))
    y = jnp.stack(ys, axis=1) + p["D"] * xs
    y = y * (z * _sigmoid(z))
    return x + _mm(y.reshape(B * L, ED), p["w_out"]).reshape(B, L, D)


def _ref_forward(x, packed):
    for p in packed["layers"]:
        x = _ref_layer(x, p)
    m = jnp.mean(x, axis=1)
    return _sigmoid(_mm(m, packed["cls_w"]) + packed["cls_b"])


if __name__ == "__main__":
    d_model, n_layers, d_state, d_conv, num_classes = 32, 2, 16, 4, 1
    B, L = 2, 8

    key = jax.random.PRNGKey(0)
    key, kx = jax.random.split(key)
    x = jax.random.normal(kx, (B, L, d_model), F32)
    raw = init_params(key, d_model, n_layers, d_state, d_conv, num_classes)

    packed = pack_params(raw, mxu_dtype=jnp.bfloat16)    # bf16 MXU operands, f32 accumulation
    out = jax.block_until_ready(mamba_classifier_forward(x, packed))

    assert out.shape == (B, num_classes)
    assert bool(jnp.all(jnp.isfinite(out)))
    # Tight check vs a pure-JAX reference using the SAME bf16 MXU casts.
    ref = _ref_forward(x, packed)
    assert bool(jnp.allclose(out, ref, atol=3e-3, rtol=3e-3)), (out, ref)
    # Loose sanity check vs the full-f32 reference (PyTorch-equivalent math).
    ref_f32 = _ref_forward(x, pack_params(raw, mxu_dtype=jnp.float32))
    assert bool(jnp.allclose(out, ref_f32, atol=5e-2, rtol=5e-2)), (out, ref_f32)

    print("KERNEL_OK")
</pallas_src>

<mosaic_0001>
module attributes {stable_mosaic.version = 11 : i64} {
  func.func @_k(%arg0: i32, %arg1: memref<8x128xf32, #tpu.memory_space<vmem>>, %arg2: memref<8x128xf32, #tpu.memory_space<vmem>>) attributes {dimension_semantics = [#tpu.dimension_semantics<arbitrary>], iteration_bounds = array<i64: 1>, scalar_prefetch = 0 : i64, scratch_operands = 0 : i64, tpu.core_type = #tpu.core_type<tc>, window_params = [{pipeline_mode = #tpu.pipeline_mode<synchronous>, transform_indices = @transform_0, window_bounds = array<i64: 8, 128>}, {pipeline_mode = #tpu.pipeline_mode<synchronous>, transform_indices = @transform_1, window_bounds = array<i64: 8, 128>}]} {
    %c0 = arith.constant 0 : index
    %c0_0 = arith.constant 0 : index
    %0 = vector.load %arg1[%c0, %c0_0] : memref<8x128xf32, #tpu.memory_space<vmem>>, vector<8x128xf32>
    %c0_1 = arith.constant 0 : index
    %c0_2 = arith.constant 0 : index
    %1 = vector.load %arg2[%c0_1, %c0_2] : memref<8x128xf32, #tpu.memory_space<vmem>>, vector<8x128xf32>
    tpu.vector_store %arg2[%c0_1, %c0_2], %0 {strides = array<i32>} : memref<8x128xf32, #tpu.memory_space<vmem>>, vector<8x128xf32>,
    return
  }
  func.func @transform_0(%arg0: i32) -> (i32, i32) {
    %c0_i32 = arith.constant 0 : i32
    %c0_i32_0 = arith.constant 0 : i32
    %c0_i32_1 = arith.constant 0 : i32
    return %c0_i32, %c0_i32_0 : i32, i32
  }
  func.func @transform_1(%arg0: i32) -> (i32, i32) {
    %c0_i32 = arith.constant 0 : i32
    %c0_i32_0 = arith.constant 0 : i32
    %c0_i32_1 = arith.constant 0 : i32
    return %c0_i32, %c0_i32_0 : i32, i32
  }
}

module attributes {stable_mosaic.version = 11 : i64} {
  func.func @_mamba_layer_kernel(%arg0: i32, %arg1: memref<2x8x32xf32, #tpu.memory_space<vmem>>, %arg2: memref<1x32xf32, #tpu.memory_space<vmem>>, %arg3: memref<32x128xbf16, #tpu.memory_space<vmem>>, %arg4: memref<4x64xf32, #tpu.memory_space<vmem>>, %arg5: memref<1x64xf32, #tpu.memory_space<vmem>>, %arg6: memref<64x34xbf16, #tpu.memory_space<vmem>>, %arg7: memref<2x64xbf16, #tpu.memory_space<vmem>>, %arg8: memref<1x64xf32, #tpu.memory_space<vmem>>, %arg9: memref<16x64xf32, #tpu.memory_space<vmem>>, %arg10: memref<1x64xf32, #tpu.memory_space<vmem>>, %arg11: memref<64x32xbf16, #tpu.memory_space<vmem>>, %arg12: memref<2x8x32xf32, #tpu.memory_space<vmem>>, %arg13: memref<2x8x64xf32, #tpu.memory_space<vmem>>, %arg14: memref<2x8x64xf32, #tpu.memory_space<vmem>>, %arg15: memref<2x8x16xf32, #tpu.memory_space<vmem>>, %arg16: memref<2x8x16xf32, #tpu.memory_space<vmem>>, %arg17: memref<2x8x16x64xf32, #tpu.memory_space<vmem>>, %arg18: memref<2x8x64xf32, #tpu.memory_space<vmem>>, %arg19: memref<2x16x64xf32, #tpu.memory_space<vmem>>) attributes {dimension_semantics = [#tpu.dimension_semantics<parallel>], iteration_bounds = array<i64: 1>, scalar_prefetch = 0 : i64, scratch_operands = 7 : i64, tpu.core_type = #tpu.core_type<tc>, window_params = [{transform_indices = @transform_0, window_bounds = array<i64: 2, 8, 32>}, {pipeline_mode = #tpu.pipeline_mode<synchronous>, transform_indices = @transform_1, window_bounds = array<i64: 1, 32>}, {pipeline_mode = #tpu.pipeline_mode<synchronous>, transform_indices = @transform_2, window_bounds = array<i64: 32, 128>}, {pipeline_mode = #tpu.pipeline_mode<synchronous>, transform_indices = @transform_3, window_bounds = array<i64: 4, 64>}, {pipeline_mode = #tpu.pipeline_mode<synchronous>, transform_indices = @transform_4, window_bounds = array<i64: 1, 64>}, {pipeline_mode = #tpu.pipeline_mode<synchronous>, transform_indices = @transform_5, window_bounds = array<i64: 64, 34>}, {pipeline_mode = #tpu.pipeline_mode<synchronous>, transform_indices = @transform_6, window_bounds = array<i64: 2, 64>}, {pipeline_mode = #tpu.pipeline_mode<synchronous>, transform_indices = @transform_7, window_bounds = array<i64: 1, 64>}, {pipeline_mode = #tpu.pipeline_mode<synchronous>, transform_indices = @transform_8, window_bounds = array<i64: 16, 64>}, {pipeline_mode = #tpu.pipeline_mode<synchronous>, transform_indices = @transform_9, window_bounds = array<i64: 1, 64>}, {pipeline_mode = #tpu.pipeline_mode<synchronous>, transform_indices = @transform_10, window_bounds = array<i64: 64, 32>}, {transform_indices = @transform_11, window_bounds = array<i64: 2, 8, 32>}]} {
    %c0 = arith.constant 0 : index
    %c0_0 = arith.constant 0 : index
    %c0_1 = arith.constant 0 : index
    %0 = vector.load %arg1[%c0, %c0_0, %c0_1] : memref<2x8x32xf32, #tpu.memory_space<vmem>>, vector<2x8x32xf32>
    %1 = arith.mulf %0, %0 : vector<2x8x32xf32>
    %cst = arith.constant dense<0.000000e+00> : vector<2x8xf32>
    %2 = vector.multi_reduction <add>, %1, %cst [2] : vector<2x8x32xf32> to vector<2x8xf32>
    %3 = vector.shape_cast %2 : vector<2x8xf32> to vector<2x8x1xf32>
    %cst_2 = arith.constant 3.200000e+01 : f32
    %4 = vector.broadcast %cst_2 : f32 to vector<2x8x1xf32>
    %5 = arith.divf %3, %4 : vector<2x8x1xf32>
    %cst_3 = arith.constant 9.99999974E-6 : f32
    %6 = vector.broadcast %cst_3 : f32 to vector<2x8x1xf32>
    %7 = arith.addf %5, %6 : vector<2x8x1xf32>
    %8 = math.rsqrt %7 : vector<2x8x1xf32>
    %9 = vector.broadcast %8 : vector<2x8x1xf32> to vector<2x8x32xf32>
    %10 = arith.mulf %0, %9 : vector<2x8x32xf32>
    %c0_4 = arith.constant 0 : index
    %c0_5 = arith.constant 0 : index
    %11 = vector.load %arg2[%c0_4, %c0_5] : memref<1x32xf32, #tpu.memory_space<vmem>>, vector<1x32xf32>
    %12 = vector.shape_cast %11 : vector<1x32xf32> to vector<1x1x32xf32>
    %13 = vector.broadcast %12 : vector<1x1x32xf32> to vector<2x8x32xf32>
    %14 = arith.mulf %10, %13 : vector<2x8x32xf32>
    %15 = vector.shape_cast %14 : vector<2x8x32xf32> to vector<16x32xf32>
    %16 = arith.truncf %15 : vector<16x32xf32> to vector<16x32xbf16>
    %c0_6 = arith.constant 0 : index
    %c0_7 = arith.constant 0 : index
    %17 = vector.load %arg3[%c0_6, %c0_7] : memref<32x128xbf16, #tpu.memory_space<vmem>>, vector<32x128xbf16>
    %cst_8 = arith.constant dense<0.000000e+00> : vector<16x128xf32>
    %18 = tpu.matmul %16, %17, %cst_8 {dimension_numbers = #tpu.dot_dimension_numbers<[1], [0], [0], [1], [0, 0, 1, 1], [], []>} : vector<16x32xbf16>, vector<32x128xbf16>, vector<16x128xf32> -> vector<16x128xf32>
    %19 = vector.extract_strided_slice %18 {offsets = [0, 0], sizes = [16, 64], strides = [1, 1]} : vector<16x128xf32> to vector<16x64xf32>
    %20 = vector.shape_cast %19 : vector<16x64xf32> to vector<2x8x64xf32>
    %21 = vector.extract_strided_slice %18 {offsets = [0, 64], sizes = [16, 64], strides = [1, 1]} : vector<16x128xf32> to vector<16x64xf32>
    %22 = vector.shape_cast %21 : vector<16x64xf32> to vector<2x8x64xf32>
    %c0_9 = arith.constant 0 : index
    %c0_10 = arith.constant 0 : index
    %23 = vector.load %arg4[%c0_9, %c0_10] : memref<4x64xf32, #tpu.memory_space<vmem>>, vector<4x64xf32>
    %cst_11 = arith.constant 0.000000e+00 : f32
    %24 = vector.broadcast %cst_11 : f32 to vector<2x3x64xf32>
    %25 = tpu.concatenate %24, %20 in 1 : vector<2x3x64xf32>, vector<2x8x64xf32> -> vector<2x11x64xf32>
    %c0_12 = arith.constant 0 : index
    %c0_13 = arith.constant 0 : index
    %26 = vector.load %arg5[%c0_12, %c0_13] : memref<1x64xf32, #tpu.memory_space<vmem>>, vector<1x64xf32>
    %27 = vector.shape_cast %26 : vector<1x64xf32> to vector<1x1x64xf32>
    %28 = vector.extract_strided_slice %23 {offsets = [0, 0], sizes = [1, 64], strides = [1, 1]} : vector<4x64xf32> to vector<1x64xf32>
    %29 = vector.shape_cast %28 : vector<1x64xf32> to vector<1x1x64xf32>
    %30 = vector.extract_strided_slice %25 {offsets = [0, 0, 0], sizes = [2, 8, 64], strides = [1, 1, 1]} : vector<2x11x64xf32> to vector<2x8x64xf32>
    %31 = vector.broadcast %29 : vector<1x1x64xf32> to vector<2x8x64xf32>
    %32 = arith.mulf %31, %30 : vector<2x8x64xf32>
    %33 = vector.broadcast %27 : vector<1x1x64xf32> to vector<2x8x64xf32>
    %34 = arith.addf %33, %32 : vector<2x8x64xf32>
    %35 = vector.extract_strided_slice %23 {offsets = [1, 0], sizes = [1, 64], strides = [1, 1]} : vector<4x64xf32> to vector<1x64xf32>
    %36 = vector.shape_cast %35 : vector<1x64xf32> to vector<1x1x64xf32>
    %37 = vector.extract_strided_slice %25 {offsets = [0, 1, 0], sizes = [2, 8, 64], strides = [1, 1, 1]} : vector<2x11x64xf32> to vector<2x8x64xf32>
    %38 = vector.broadcast %36 : vector<1x1x64xf32> to vector<2x8x64xf32>
    %39 = arith.mulf %38, %37 : vector<2x8x64xf32>
    %40 = arith.addf %34, %39 : vector<2x8x64xf32>
    %41 = vector.extract_strided_slice %23 {offsets = [2, 0], sizes = [1, 64], strides = [1, 1]} : vector<4x64xf32> to vector<1x64xf32>
    %42 = vector.shape_cast %41 : vector<1x64xf32> to vector<1x1x64xf32>
    %43 = vector.extract_strided_slice %25 {offsets = [0, 2, 0], sizes = [2, 8, 64], strides = [1, 1, 1]} : vector<2x11x64xf32> to vector<2x8x64xf32>
    %44 = vector.broadcast %42 : vector<1x1x64xf32> to vector<2x8x64xf32>
    %45 = arith.mulf %44, %43 : vector<2x8x64xf32>
    %46 = arith.addf %40, %45 : vector<2x8x64xf32>
    %47 = vector.extract_strided_slice %23 {offsets = [3, 0], sizes = [1, 64], strides = [1, 1]} : vector<4x64xf32> to vector<1x64xf32>
    %48 = vector.shape_cast %47 : vector<1x64xf32> to vector<1x1x64xf32>
    %49 = vector.extract_strided_slice %25 {offsets = [0, 3, 0], sizes = [2, 8, 64], strides = [1, 1, 1]} : vector<2x11x64xf32> to vector<2x8x64xf32>
    %50 = vector.broadcast %48 : vector<1x1x64xf32> to vector<2x8x64xf32>
    %51 = arith.mulf %50, %49 : vector<2x8x64xf32>
    %52 = arith.addf %46, %51 : vector<2x8x64xf32>
    %53 = math.absf %52 : vector<2x8x64xf32>
    %cst_14 = arith.constant 0.000000e+00 : f32
    %54 = vector.broadcast %cst_14 : f32 to vector<2x8x64xf32>
    %55 = arith.subf %54, %53 : vector<2x8x64xf32>
    %56 = math.exp %55 : vector<2x8x64xf32>
    %cst_15 = arith.constant 0.000000e+00 : f32
    %57 = vector.broadcast %cst_15 : f32 to vector<2x8x64xf32>
    %58 = arith.cmpf oge, %52, %57 : vector<2x8x64xf32>
    %cst_16 = arith.constant 1.000000e+00 : f32
    %59 = vector.broadcast %cst_16 : f32 to vector<2x8x64xf32>
    %60 = arith.addf %59, %56 : vector<2x8x64xf32>
    %cst_17 = arith.constant 1.000000e+00 : f32
    %61 = vector.broadcast %cst_17 : f32 to vector<2x8x64xf32>
    %62 = arith.divf %61, %60 : vector<2x8x64xf32>
    %cst_18 = arith.constant 1.000000e+00 : f32
    %63 = vector.broadcast %cst_18 : f32 to vector<2x8x64xf32>
    %64 = arith.addf %63, %56 : vector<2x8x64xf32>
    %65 = arith.divf %56, %64 : vector<2x8x64xf32>
    %66 = arith.select %58, %62, %65 : vector<2x8x64xi1>, vector<2x8x64xf32>
    %67 = arith.mulf %52, %66 : vector<2x8x64xf32>
    %68 = vector.shape_cast %67 : vector<2x8x64xf32> to vector<16x64xf32>
    %69 = arith.truncf %68 : vector<16x64xf32> to vector<16x64xbf16>
    %c0_19 = arith.constant 0 : index
    %c0_20 = arith.constant 0 : index
    %70 = vector.load %arg6[%c0_19, %c0_20] : memref<64x34xbf16, #tpu.memory_space<vmem>>, vector<64x34xbf16>
    %cst_21 = arith.constant dense<0.000000e+00> : vector<16x34xf32>
    %71 = tpu.matmul %69, %70, %cst_21 {dimension_numbers = #tpu.dot_dimension_numbers<[1], [0], [0], [1], [0, 0, 1, 1], [], []>} : vector<16x64xbf16>, vector<64x34xbf16>, vector<16x34xf32> -> vector<16x34xf32>
    %72 = vector.extract_strided_slice %71 {offsets = [0, 0], sizes = [16, 2], strides = [1, 1]} : vector<16x34xf32> to vector<16x2xf32>
    %73 = vector.extract_strided_slice %71 {offsets = [0, 2], sizes = [16, 16], strides = [1, 1]} : vector<16x34xf32> to vector<16x16xf32>
    %74 = vector.extract_strided_slice %71 {offsets = [0, 18], sizes = [16, 16], strides = [1, 1]} : vector<16x34xf32> to vector<16x16xf32>
    %75 = arith.truncf %72 : vector<16x2xf32> to vector<16x2xbf16>
    %c0_22 = arith.constant 0 : index
    %c0_23 = arith.constant 0 : index
    %76 = vector.load %arg7[%c0_22, %c0_23] : memref<2x64xbf16, #tpu.memory_space<vmem>>, vector<2x64xbf16>
    %cst_24 = arith.constant dense<0.000000e+00> : vector<16x64xf32>
    %77 = tpu.matmul %75, %76, %cst_24 {dimension_numbers = #tpu.dot_dimension_numbers<[1], [0], [0], [1], [0, 0, 1, 1], [], []>} : vector<16x2xbf16>, vector<2x64xbf16>, vector<16x64xf32> -> vector<16x64xf32>
    %c0_25 = arith.constant 0 : index
    %c0_26 = arith.constant 0 : index
    %78 = vector.load %arg8[%c0_25, %c0_26] : memref<1x64xf32, #tpu.memory_space<vmem>>, vector<1x64xf32>
    %79 = vector.broadcast %78 : vector<1x64xf32> to vector<16x64xf32>
    %80 = arith.addf %77, %79 : vector<16x64xf32>
    %cst_27 = arith.constant 0.000000e+00 : f32
    %81 = vector.broadcast %cst_27 : f32 to vector<16x64xf32>
    %82 = arith.maximumf %80, %81 : vector<16x64xf32>
    %83 = math.absf %80 : vector<16x64xf32>
    %cst_28 = arith.constant 0.000000e+00 : f32
    %84 = vector.broadcast %cst_28 : f32 to vector<16x64xf32>
    %85 = arith.subf %84, %83 : vector<16x64xf32>
    %86 = math.exp %85 : vector<16x64xf32>
    %cst_29 = arith.constant 1.000000e+00 : f32
    %87 = vector.broadcast %cst_29 : f32 to vector<16x64xf32>
    %88 = arith.addf %87, %86 : vector<16x64xf32>
    %89 = math.log %88 : vector<16x64xf32>
    %90 = arith.addf %82, %89 : vector<16x64xf32>
    %91 = vector.shape_cast %90 : vector<16x64xf32> to vector<2x8x64xf32>
    %c0_30 = arith.constant 0 : index
    %c0_31 = arith.constant 0 : index
    %c0_32 = arith.constant 0 : index
    %92 = vector.load %arg13[%c0_30, %c0_31, %c0_32] : memref<2x8x64xf32, #tpu.memory_space<vmem>>, vector<2x8x64xf32>
    tpu.vector_store %arg13[%c0_30, %c0_31, %c0_32], %91 {strides = array<i32>} : memref<2x8x64xf32, #tpu.memory_space<vmem>>, vector<2x8x64xf32>,
    %93 = arith.mulf %91, %67 : vector<2x8x64xf32>
    %c0_33 = arith.constant 0 : index
    %c0_34 = arith.constant 0 : index
    %c0_35 = arith.constant 0 : index
    %94 = vector.load %arg14[%c0_33, %c0_34, %c0_35] : memref<2x8x64xf32, #tpu.memory_space<vmem>>, vector<2x8x64xf32>
    tpu.vector_store %arg14[%c0_33, %c0_34, %c0_35], %93 {strides = array<i32>} : memref<2x8x64xf32, #tpu.memory_space<vmem>>, vector<2x8x64xf32>,
    %95 = vector.shape_cast %73 : vector<16x16xf32> to vector<2x8x16xf32>
    %c0_36 = arith.constant 0 : index
    %c0_37 = arith.constant 0 : index
    %c0_38 = arith.constant 0 : index
    %96 = vector.load %arg15[%c0_36, %c0_37, %c0_38] : memref<2x8x16xf32, #tpu.memory_space<vmem>>, vector<2x8x16xf32>
    tpu.vector_store %arg15[%c0_36, %c0_37, %c0_38], %95 {strides = array<i32>} : memref<2x8x16xf32, #tpu.memory_space<vmem>>, vector<2x8x16xf32>,
    %97 = vector.shape_cast %74 : vector<16x16xf32> to vector<2x8x16xf32>
    %c0_39 = arith.constant 0 : index
    %c0_40 = arith.constant 0 : index
    %c0_41 = arith.constant 0 : index
    %98 = vector.load %arg16[%c0_39, %c0_40, %c0_41] : memref<2x8x16xf32, #tpu.memory_space<vmem>>, vector<2x8x16xf32>
    tpu.vector_store %arg16[%c0_39, %c0_40, %c0_41], %97 {strides = array<i32>} : memref<2x8x16xf32, #tpu.memory_space<vmem>>, vector<2x8x16xf32>,
    %cst_42 = arith.constant 0.000000e+00 : f32
    %99 = vector.broadcast %cst_42 : f32 to vector<2x16x64xf32>
    %c0_43 = arith.constant 0 : index
    %c0_44 = arith.constant 0 : index
    %c0_45 = arith.constant 0 : index
    %100 = vector.load %arg19[%c0_43, %c0_44, %c0_45] : memref<2x16x64xf32, #tpu.memory_space<vmem>>, vector<2x16x64xf32>
    tpu.vector_store %arg19[%c0_43, %c0_44, %c0_45], %99 {strides = array<i32>} : memref<2x16x64xf32, #tpu.memory_space<vmem>>, vector<2x16x64xf32>,
    %c0_46 = arith.constant 0 : index
    %c0_47 = arith.constant 0 : index
    %101 = vector.load %arg9[%c0_46, %c0_47] : memref<16x64xf32, #tpu.memory_space<vmem>>, vector<16x64xf32>
    %c0_i32 = arith.constant 0 : i32
    %c8_i32 = arith.constant 8 : i32
    %102 = arith.muli %c0_i32, %c8_i32 : i32
    %103 = tpu.assume_multiple %102, 8 : i32
    %c0_48 = arith.constant 0 : index
    %104 = arith.index_cast %103 : i32 to index
    %c0_49 = arith.constant 0 : index
    %105 = vector.load %arg13[%c0_48, %104, %c0_49] : memref<2x8x64xf32, #tpu.memory_space<vmem>>, vector<2x8x64xf32>
    %106 = vector.shape_cast %105 : vector<2x8x64xf32> to vector<2x8x1x64xf32>
    %107 = vector.shape_cast %101 : vector<16x64xf32> to vector<1x1x16x64xf32>
    %108 = vector.broadcast %106 : vector<2x8x1x64xf32> to vector<2x8x16x64xf32>
    %109 = vector.broadcast %107 : vector<1x1x16x64xf32> to vector<2x8x16x64xf32>
    %110 = arith.mulf %108, %109 : vector<2x8x16x64xf32>
    %111 = math.exp %110 : vector<2x8x16x64xf32>
    %c0_50 = arith.constant 0 : index
    %c0_51 = arith.constant 0 : index
    %c0_52 = arith.constant 0 : index
    %c0_53 = arith.constant 0 : index
    %112 = vector.load %arg17[%c0_50, %c0_51, %c0_52, %c0_53] : memref<2x8x16x64xf32, #tpu.memory_space<vmem>>, vector<2x8x16x64xf32>
    tpu.vector_store %arg17[%c0_50, %c0_51, %c0_52, %c0_53], %111 {strides = array<i32>} : memref<2x8x16x64xf32, #tpu.memory_space<vmem>>, vector<2x8x16x64xf32>,
    %c0_54 = arith.constant 0 : index
    %113 = arith.index_cast %103 : i32 to index
    %c0_55 = arith.constant 0 : index
    %114 = vector.load %arg14[%c0_54, %113, %c0_55] : memref<2x8x64xf32, #tpu.memory_space<vmem>>, vector<2x8x64xf32>
    %c0_56 = arith.constant 0 : index
    %115 = arith.index_cast %103 : i32 to index
    %c0_57 = arith.constant 0 : index
    %116 = vector.load %arg15[%c0_56, %115, %c0_57] : memref<2x8x16xf32, #tpu.memory_space<vmem>>, vector<2x8x16xf32>
    %c0_58 = arith.constant 0 : index
    %117 = arith.index_cast %103 : i32 to index
    %c0_59 = arith.constant 0 : index
    %118 = vector.load %arg16[%c0_58, %117, %c0_59] : memref<2x8x16xf32, #tpu.memory_space<vmem>>, vector<2x8x16xf32>
    %c0_60 = arith.constant 0 : index
    %c0_61 = arith.constant 0 : index
    %c0_62 = arith.constant 0 : index
    %119 = vector.load %arg19[%c0_60, %c0_61, %c0_62] : memref<2x16x64xf32, #tpu.memory_space<vmem>>, vector<2x16x64xf32>
    %c0_63 = arith.constant 0 : index
    %c0_64 = arith.constant 0 : index
    %c0_65 = arith.constant 0 : index
    %c0_66 = arith.constant 0 : index
    %120 = vector.load %arg17[%c0_63, %c0_64, %c0_65, %c0_66] : memref<2x8x16x64xf32, #tpu.memory_space<vmem>>, vector<2x1x16x64xf32>
    %121 = vector.shape_cast %120 : vector<2x1x16x64xf32> to vector<2x16x64xf32>
    %122 = vector.extract_strided_slice %116 {offsets = [0, 0, 0], sizes = [2, 1, 16], strides = [1, 1, 1]} : vector<2x8x16xf32> to vector<2x1x16xf32>
    %123 = vector.shape_cast %122 : vector<2x1x16xf32> to vector<2x16xf32>
    %124 = vector.extract_strided_slice %118 {offsets = [0, 0, 0], sizes = [2, 1, 16], strides = [1, 1, 1]} : vector<2x8x16xf32> to vector<2x1x16xf32>
    %125 = vector.shape_cast %124 : vector<2x1x16xf32> to vector<2x16xf32>
    %126 = vector.extract_strided_slice %114 {offsets = [0, 0, 0], sizes = [2, 1, 64], strides = [1, 1, 1]} : vector<2x8x64xf32> to vector<2x1x64xf32>
    %127 = vector.shape_cast %126 : vector<2x1x64xf32> to vector<2x64xf32>
    %128 = arith.mulf %121, %119 : vector<2x16x64xf32>
    %129 = vector.shape_cast %123 : vector<2x16xf32> to vector<2x16x1xf32>
    %130 = vector.shape_cast %127 : vector<2x64xf32> to vector<2x1x64xf32>
    %131 = vector.broadcast %129 : vector<2x16x1xf32> to vector<2x16x64xf32>
    %132 = vector.broadcast %130 : vector<2x1x64xf32> to vector<2x16x64xf32>
    %133 = arith.mulf %131, %132 : vector<2x16x64xf32>
    %134 = arith.addf %128, %133 : vector<2x16x64xf32>
    %135 = vector.shape_cast %125 : vector<2x16xf32> to vector<2x16x1xf32>
    %136 = vector.broadcast %135 : vector<2x16x1xf32> to vector<2x16x64xf32>
    %137 = arith.mulf %134, %136 : vector<2x16x64xf32>
    %cst_67 = arith.constant dense<0.000000e+00> : vector<2x64xf32>
    %138 = vector.multi_reduction <add>, %137, %cst_67 [1] : vector<2x16x64xf32> to vector<2x64xf32>
    %c0_68 = arith.constant 0 : index
    %c1 = arith.constant 1 : index
    %c0_69 = arith.constant 0 : index
    %c0_70 = arith.constant 0 : index
    %139 = vector.load %arg17[%c0_68, %c1, %c0_69, %c0_70] : memref<2x8x16x64xf32, #tpu.memory_space<vmem>>, vector<2x1x16x64xf32>
    %140 = vector.shape_cast %139 : vector<2x1x16x64xf32> to vector<2x16x64xf32>
    %141 = vector.extract_strided_slice %116 {offsets = [0, 1, 0], sizes = [2, 1, 16], strides = [1, 1, 1]} : vector<2x8x16xf32> to vector<2x1x16xf32>
    %142 = vector.shape_cast %141 : vector<2x1x16xf32> to vector<2x16xf32>
    %143 = vector.extract_strided_slice %118 {offsets = [0, 1, 0], sizes = [2, 1, 16], strides = [1, 1, 1]} : vector<2x8x16xf32> to vector<2x1x16xf32>
    %144 = vector.shape_cast %143 : vector<2x1x16xf32> to vector<2x16xf32>
    %145 = vector.extract_strided_slice %114 {offsets = [0, 1, 0], sizes = [2, 1, 64], strides = [1, 1, 1]} : vector<2x8x64xf32> to vector<2x1x64xf32>
    %146 = vector.shape_cast %145 : vector<2x1x64xf32> to vector<2x64xf32>
    %147 = arith.mulf %140, %134 : vector<2x16x64xf32>
    %148 = vector.shape_cast %142 : vector<2x16xf32> to vector<2x16x1xf32>
    %149 = vector.shape_cast %146 : vector<2x64xf32> to vector<2x1x64xf32>
    %150 = vector.broadcast %148 : vector<2x16x1xf32> to vector<2x16x64xf32>
    %151 = vector.broadcast %149 : vector<2x1x64xf32> to vector<2x16x64xf32>
    %152 = arith.mulf %150, %151 : vector<2x16x64xf32>
    %153 = arith.addf %147, %152 : vector<2x16x64xf32>
    %154 = vector.shape_cast %144 : vector<2x16xf32> to vector<2x16x1xf32>
    %155 = vector.broadcast %154 : vector<2x16x1xf32> to vector<2x16x64xf32>
    %156 = arith.mulf %153, %155 : vector<2x16x64xf32>
    %cst_71 = arith.constant dense<0.000000e+00> : vector<2x64xf32>
    %157 = vector.multi_reduction <add>, %156, %cst_71 [1] : vector<2x16x64xf32> to vector<2x64xf32>
    %c0_72 = arith.constant 0 : index
    %c2 = arith.constant 2 : index
    %c0_73 = arith.constant 0 : index
    %c0_74 = arith.constant 0 : index
    %158 = vector.load %arg17[%c0_72, %c2, %c0_73, %c0_74] : memref<2x8x16x64xf32, #tpu.memory_space<vmem>>, vector<2x1x16x64xf32>
    %159 = vector.shape_cast %158 : vector<2x1x16x64xf32> to vector<2x16x64xf32>
    %160 = vector.extract_strided_slice %116 {offsets = [0, 2, 0], sizes = [2, 1, 16], strides = [1, 1, 1]} : vector<2x8x16xf32> to vector<2x1x16xf32>
    %161 = vector.shape_cast %160 : vector<2x1x16xf32> to vector<2x16xf32>
    %162 = vector.extract_strided_slice %118 {offsets = [0, 2, 0], sizes = [2, 1, 16], strides = [1, 1, 1]} : vector<2x8x16xf32> to vector<2x1x16xf32>
    %163 = vector.shape_cast %162 : vector<2x1x16xf32> to vector<2x16xf32>
    %164 = vector.extract_strided_slice %114 {offsets = [0, 2, 0], sizes = [2, 1, 64], strides = [1, 1, 1]} : vector<2x8x64xf32> to vector<2x1x64xf32>
    %165 = vector.shape_cast %164 : vector<2x1x64xf32> to vector<2x64xf32>
    %166 = arith.mulf %159, %153 : vector<2x16x64xf32>
    %167 = vector.shape_cast %161 : vector<2x16xf32> to vector<2x16x1xf32>
    %168 = vector.shape_cast %165 : vector<2x64xf32> to vector<2x1x64xf32>
    %169 = vector.broadcast %167 : vector<2x16x1xf32> to vector<2x16x64xf32>
    %170 = vector.broadcast %168 : vector<2x1x64xf32> to vector<2x16x64xf32>
    %171 = arith.mulf %169, %170 : vector<2x16x64xf32>
    %172 = arith.addf %166, %171 : vector<2x16x64xf32>
    %173 = vector.shape_cast %163 : vector<2x16xf32> to vector<2x16x1xf32>
    %174 = vector.broadcast %173 : vector<2x16x1xf32> to vector<2x16x64xf32>
    %175 = arith.mulf %172, %174 : vector<2x16x64xf32>
    %cst_75 = arith.constant dense<0.000000e+00> : vector<2x64xf32>
    %176 = vector.multi_reduction <add>, %175, %cst_75 [1] : vector<2x16x64xf32> to vector<2x64xf32>
    %c0_76 = arith.constant 0 : index
    %c3 = arith.constant 3 : index
    %c0_77 = arith.constant 0 : index
    %c0_78 = arith.constant 0 : index
    %177 = vector.load %arg17[%c0_76, %c3, %c0_77, %c0_78] : memref<2x8x16x64xf32, #tpu.memory_space<vmem>>, vector<2x1x16x64xf32>
    %178 = vector.shape_cast %177 : vector<2x1x16x64xf32> to vector<2x16x64xf32>
    %179 = vector.extract_strided_slice %116 {offsets = [0, 3, 0], sizes = [2, 1, 16], strides = [1, 1, 1]} : vector<2x8x16xf32> to vector<2x1x16xf32>
    %180 = vector.shape_cast %179 : vector<2x1x16xf32> to vector<2x16xf32>
    %181 = vector.extract_strided_slice %118 {offsets = [0, 3, 0], sizes = [2, 1, 16], strides = [1, 1, 1]} : vector<2x8x16xf32> to vector<2x1x16xf32>
    %182 = vector.shape_cast %181 : vector<2x1x16xf32> to vector<2x16xf32>
    %183 = vector.extract_strided_slice %114 {offsets = [0, 3, 0], sizes = [2, 1, 64], strides = [1, 1, 1]} : vector<2x8x64xf32> to vector<2x1x64xf32>
    %184 = vector.shape_cast %183 : vector<2x1x64xf32> to vector<2x64xf32>
    %185 = arith.mulf %178, %172 : vector<2x16x64xf32>
    %186 = vector.shape_cast %180 : vector<2x16xf32> to vector<2x16x1xf32>
    %187 = vector.shape_cast %184 : vector<2x64xf32> to vector<2x1x64xf32>
    %188 = vector.broadcast %186 : vector<2x16x1xf32> to vector<2x16x64xf32>
    %189 = vector.broadcast %187 : vector<2x1x64xf32> to vector<2x16x64xf32>
    %190 = arith.mulf %188, %189 : vector<2x16x64xf32>
    %191 = arith.addf %185, %190 : vector<2x16x64xf32>
    %192 = vector.shape_cast %182 : vector<2x16xf32> to vector<2x16x1xf32>
    %193 = vector.broadcast %192 : vector<2x16x1xf32> to vector<2x16x64xf32>
    %194 = arith.mulf %191, %193 : vector<2x16x64xf32>
    %cst_79 = arith.constant dense<0.000000e+00> : vector<2x64xf32>
    %195 = vector.multi_reduction <add>, %194, %cst_79 [1] : vector<2x16x64xf32> to vector<2x64xf32>
    %c0_80 = arith.constant 0 : index
    %c4 = arith.constant 4 : index
    %c0_81 = arith.constant 0 : index
    %c0_82 = arith.constant 0 : index
    %196 = vector.load %arg17[%c0_80, %c4, %c0_81, %c0_82] : memref<2x8x16x64xf32, #tpu.memory_space<vmem>>, vector<2x1x16x64xf32>
    %197 = vector.shape_cast %196 : vector<2x1x16x64xf32> to vector<2x16x64xf32>
    %198 = vector.extract_strided_slice %116 {offsets = [0, 4, 0], sizes = [2, 1, 16], strides = [1, 1, 1]} : vector<2x8x16xf32> to vector<2x1x16xf32>
    %199 = vector.shape_cast %198 : vector<2x1x16xf32> to vector<2x16xf32>
    %200 = vector.extract_strided_slice %118 {offsets = [0, 4, 0], sizes = [2, 1, 16], strides = [1, 1, 1]} : vector<2x8x16xf32> to vector<2x1x16xf32>
    %201 = vector.shape_cast %200 : vector<2x1x16xf32> to vector<2x16xf32>
    %202 = vector.extract_strided_slice %114 {offsets = [0, 4, 0], sizes = [2, 1, 64], strides = [1, 1, 1]} : vector<2x8x64xf32> to vector<2x1x64xf32>
    %203 = vector.shape_cast %202 : vector<2x1x64xf32> to vector<2x64xf32>
    %204 = arith.mulf %197, %191 : vector<2x16x64xf32>
    %205 = vector.shape_cast %199 : vector<2x16xf32> to vector<2x16x1xf32>
    %206 = vector.shape_cast %203 : vector<2x64xf32> to vector<2x1x64xf32>
    %207 = vector.broadcast %205 : vector<2x16x1xf32> to vector<2x16x64xf32>
    %208 = vector.broadcast %206 : vector<2x1x64xf32> to vector<2x16x64xf32>
    %209 = arith.mulf %207, %208 : vector<2x16x64xf32>
    %210 = arith.addf %204, %209 : vector<2x16x64xf32>
    %211 = vector.shape_cast %201 : vector<2x16xf32> to vector<2x16x1xf32>
    %212 = vector.broadcast %211 : vector<2x16x1xf32> to vector<2x16x64xf32>
    %213 = arith.mulf %210, %212 : vector<2x16x64xf32>
    %cst_83 = arith.constant dense<0.000000e+00> : vector<2x64xf32>
    %214 = vector.multi_reduction <add>, %213, %cst_83 [1] : vector<2x16x64xf32> to vector<2x64xf32>
    %c0_84 = arith.constant 0 : index
    %c5 = arith.constant 5 : index
    %c0_85 = arith.constant 0 : index
    %c0_86 = arith.constant 0 : index
    %215 = vector.load %arg17[%c0_84, %c5, %c0_85, %c0_86] : memref<2x8x16x64xf32, #tpu.memory_space<vmem>>, vector<2x1x16x64xf32>
    %216 = vector.shape_cast %215 : vector<2x1x16x64xf32> to vector<2x16x64xf32>
    %217 = vector.extract_strided_slice %116 {offsets = [0, 5, 0], sizes = [2, 1, 16], strides = [1, 1, 1]} : vector<2x8x16xf32> to vector<2x1x16xf32>
    %218 = vector.shape_cast %217 : vector<2x1x16xf32> to vector<2x16xf32>
    %219 = vector.extract_strided_slice %118 {offsets = [0, 5, 0], sizes = [2, 1, 16], strides = [1, 1, 1]} : vector<2x8x16xf32> to vector<2x1x16xf32>
    %220 = vector.shape_cast %219 : vector<2x1x16xf32> to vector<2x16xf32>
    %221 = vector.extract_strided_slice %114 {offsets = [0, 5, 0], sizes = [2, 1, 64], strides = [1, 1, 1]} : vector<2x8x64xf32> to vector<2x1x64xf32>
    %222 = vector.shape_cast %221 : vector<2x1x64xf32> to vector<2x64xf32>
    %223 = arith.mulf %216, %210 : vector<2x16x64xf32>
    %224 = vector.shape_cast %218 : vector<2x16xf32> to vector<2x16x1xf32>
    %225 = vector.shape_cast %222 : vector<2x64xf32> to vector<2x1x64xf32>
    %226 = vector.broadcast %224 : vector<2x16x1xf32> to vector<2x16x64xf32>
    %227 = vector.broadcast %225 : vector<2x1x64xf32> to vector<2x16x64xf32>
    %228 = arith.mulf %226, %227 : vector<2x16x64xf32>
    %229 = arith.addf %223, %228 : vector<2x16x64xf32>
    %230 = vector.shape_cast %220 : vector<2x16xf32> to vector<2x16x1xf32>
    %231 = vector.broadcast %230 : vector<2x16x1xf32> to vector<2x16x64xf32>
    %232 = arith.mulf %229, %231 : vector<2x16x64xf32>
    %cst_87 = arith.constant dense<0.000000e+00> : vector<2x64xf32>
    %233 = vector.multi_reduction <add>, %232, %cst_87 [1] : vector<2x16x64xf32> to vector<2x64xf32>
    %c0_88 = arith.constant 0 : index
    %c6 = arith.constant 6 : index
    %c0_89 = arith.constant 0 : index
    %c0_90 = arith.constant 0 : index
    %234 = vector.load %arg17[%c0_88, %c6, %c0_89, %c0_90] : memref<2x8x16x64xf32, #tpu.memory_space<vmem>>, vector<2x1x16x64xf32>
    %235 = vector.shape_cast %234 : vector<2x1x16x64xf32> to vector<2x16x64xf32>
    %236 = vector.extract_strided_slice %116 {offsets = [0, 6, 0], sizes = [2, 1, 16], strides = [1, 1, 1]} : vector<2x8x16xf32> to vector<2x1x16xf32>
    %237 = vector.shape_cast %236 : vector<2x1x16xf32> to vector<2x16xf32>
    %238 = vector.extract_strided_slice %118 {offsets = [0, 6, 0], sizes = [2, 1, 16], strides = [1, 1, 1]} : vector<2x8x16xf32> to vector<2x1x16xf32>
    %239 = vector.shape_cast %238 : vector<2x1x16xf32> to vector<2x16xf32>
    %240 = vector.extract_strided_slice %114 {offsets = [0, 6, 0], sizes = [2, 1, 64], strides = [1, 1, 1]} : vector<2x8x64xf32> to vector<2x1x64xf32>
    %241 = vector.shape_cast %240 : vector<2x1x64xf32> to vector<2x64xf32>
    %242 = arith.mulf %235, %229 : vector<2x16x64xf32>
    %243 = vector.shape_cast %237 : vector<2x16xf32> to vector<2x16x1xf32>
    %244 = vector.shape_cast %241 : vector<2x64xf32> to vector<2x1x64xf32>
    %245 = vector.broadcast %243 : vector<2x16x1xf32> to vector<2x16x64xf32>
    %246 = vector.broadcast %244 : vector<2x1x64xf32> to vector<2x16x64xf32>
    %247 = arith.mulf %245, %246 : vector<2x16x64xf32>
    %248 = arith.addf %242, %247 : vector<2x16x64xf32>
    %249 = vector.shape_cast %239 : vector<2x16xf32> to vector<2x16x1xf32>
    %250 = vector.broadcast %249 : vector<2x16x1xf32> to vector<2x16x64xf32>
    %251 = arith.mulf %248, %250 : vector<2x16x64xf32>
    %cst_91 = arith.constant dense<0.000000e+00> : vector<2x64xf32>
    %252 = vector.multi_reduction <add>, %251, %cst_91 [1] : vector<2x16x64xf32> to vector<2x64xf32>
    %c0_92 = arith.constant 0 : index
    %c7 = arith.constant 7 : index
    %c0_93 = arith.constant 0 : index
    %c0_94 = arith.constant 0 : index
    %253 = vector.load %arg17[%c0_92, %c7, %c0_93, %c0_94] : memref<2x8x16x64xf32, #tpu.memory_space<vmem>>, vector<2x1x16x64xf32>
    %254 = vector.shape_cast %253 : vector<2x1x16x64xf32> to vector<2x16x64xf32>
    %255 = vector.extract_strided_slice %116 {offsets = [0, 7, 0], sizes = [2, 1, 16], strides = [1, 1, 1]} : vector<2x8x16xf32> to vector<2x1x16xf32>
    %256 = vector.shape_cast %255 : vector<2x1x16xf32> to vector<2x16xf32>
    %257 = vector.extract_strided_slice %118 {offsets = [0, 7, 0], sizes = [2, 1, 16], strides = [1, 1, 1]} : vector<2x8x16xf32> to vector<2x1x16xf32>
    %258 = vector.shape_cast %257 : vector<2x1x16xf32> to vector<2x16xf32>
    %259 = vector.extract_strided_slice %114 {offsets = [0, 7, 0], sizes = [2, 1, 64], strides = [1, 1, 1]} : vector<2x8x64xf32> to vector<2x1x64xf32>
    %260 = vector.shape_cast %259 : vector<2x1x64xf32> to vector<2x64xf32>
    %261 = arith.mulf %254, %248 : vector<2x16x64xf32>
    %262 = vector.shape_cast %256 : vector<2x16xf32> to vector<2x16x1xf32>
    %263 = vector.shape_cast %260 : vector<2x64xf32> to vector<2x1x64xf32>
    %264 = vector.broadcast %262 : vector<2x16x1xf32> to vector<2x16x64xf32>
    %265 = vector.broadcast %263 : vector<2x1x64xf32> to vector<2x16x64xf32>
    %266 = arith.mulf %264, %265 : vector<2x16x64xf32>
    %267 = arith.addf %261, %266 : vector<2x16x64xf32>
    %268 = vector.shape_cast %258 : vector<2x16xf32> to vector<2x16x1xf32>
    %269 = vector.broadcast %268 : vector<2x16x1xf32> to vector<2x16x64xf32>
    %270 = arith.mulf %267, %269 : vector<2x16x64xf32>
    %cst_95 = arith.constant dense<0.000000e+00> : vector<2x64xf32>
    %271 = vector.multi_reduction <add>, %270, %cst_95 [1] : vector<2x16x64xf32> to vector<2x64xf32>
    %c0_96 = arith.constant 0 : index
    %c0_97 = arith.constant 0 : index
    %c0_98 = arith.constant 0 : index
    %272 = vector.load %arg19[%c0_96, %c0_97, %c0_98] : memref<2x16x64xf32, #tpu.memory_space<vmem>>, vector<2x16x64xf32>
    tpu.vector_store %arg19[%c0_96, %c0_97, %c0_98], %267 {strides = array<i32>} : memref<2x16x64xf32, #tpu.memory_space<vmem>>, vector<2x16x64xf32>,
    %273 = vector.shape_cast %138 : vector<2x64xf32> to vector<2x1x64xf32>
    %274 = vector.shape_cast %157 : vector<2x64xf32> to vector<2x1x64xf32>
    %275 = vector.shape_cast %176 : vector<2x64xf32> to vector<2x1x64xf32>
    %276 = vector.shape_cast %195 : vector<2x64xf32> to vector<2x1x64xf32>
    %277 = vector.shape_cast %214 : vector<2x64xf32> to vector<2x1x64xf32>
    %278 = vector.shape_cast %233 : vector<2x64xf32> to vector<2x1x64xf32>
    %279 = vector.shape_cast %252 : vector<2x64xf32> to vector<2x1x64xf32>
    %280 = vector.shape_cast %271 : vector<2x64xf32> to vector<2x1x64xf32>
    %281 = tpu.concatenate %273, %274, %275, %276, %277, %278, %279, %280 in 1 : vector<2x1x64xf32>, vector<2x1x64xf32>, vector<2x1x64xf32>, vector<2x1x64xf32>, vector<2x1x64xf32>, vector<2x1x64xf32>, vector<2x1x64xf32>, vector<2x1x64xf32> -> vector<2x8x64xf32>
    %c0_99 = arith.constant 0 : index
    %282 = arith.index_cast %103 : i32 to index
    %c0_100 = arith.constant 0 : index
    %283 = vector.load %arg18[%c0_99, %282, %c0_100] : memref<2x8x64xf32, #tpu.memory_space<vmem>>, vector<2x8x64xf32>
    tpu.vector_store %arg18[%c0_99, %282, %c0_100], %281 {strides = array<i32>} : memref<2x8x64xf32, #tpu.memory_space<vmem>>, vector<2x8x64xf32>,
    %c1_i32 = arith.constant 1 : i32
    %c0_101 = arith.constant 0 : index
    %c0_102 = arith.constant 0 : index
    %c0_103 = arith.constant 0 : index
    %284 = vector.load %arg18[%c0_101, %c0_102, %c0_103] : memref<2x8x64xf32, #tpu.memory_space<vmem>>, vector<2x8x64xf32>
    %c0_104 = arith.constant 0 : index
    %c0_105 = arith.constant 0 : index
    %285 = vector.load %arg10[%c0_104, %c0_105] : memref<1x64xf32, #tpu.memory_space<vmem>>, vector<1x64xf32>
    %286 = vector.shape_cast %285 : vector<1x64xf32> to vector<1x1x64xf32>
    %287 = vector.broadcast %286 : vector<1x1x64xf32> to vector<2x8x64xf32>
    %288 = arith.mulf %287, %67 : vector<2x8x64xf32>
    %289 = arith.addf %284, %288 : vector<2x8x64xf32>
    %290 = math.absf %22 : vector<2x8x64xf32>
    %cst_106 = arith.constant 0.000000e+00 : f32
    %291 = vector.broadcast %cst_106 : f32 to vector<2x8x64xf32>
    %292 = arith.subf %291, %290 : vector<2x8x64xf32>
    %293 = math.exp %292 : vector<2x8x64xf32>
    %cst_107 = arith.constant 0.000000e+00 : f32
    %294 = vector.broadcast %cst_107 : f32 to vector<2x8x64xf32>
    %295 = arith.cmpf oge, %22, %294 : vector<2x8x64xf32>
    %cst_108 = arith.constant 1.000000e+00 : f32
    %296 = vector.broadcast %cst_108 : f32 to vector<2x8x64xf32>
    %297 = arith.addf %296, %293 : vector<2x8x64xf32>
    %cst_109 = arith.constant 1.000000e+00 : f32
    %298 = vector.broadcast %cst_109 : f32 to vector<2x8x64xf32>
    %299 = arith.divf %298, %297 : vector<2x8x64xf32>
    %cst_110 = arith.constant 1.000000e+00 : f32
    %300 = vector.broadcast %cst_110 : f32 to vector<2x8x64xf32>
    %301 = arith.addf %300, %293 : vector<2x8x64xf32>
    %302 = arith.divf %293, %301 : vector<2x8x64xf32>
    %303 = arith.select %295, %299, %302 : vector<2x8x64xi1>, vector<2x8x64xf32>
    %304 = arith.mulf %22, %303 : vector<2x8x64xf32>
    %305 = arith.mulf %289, %304 : vector<2x8x64xf32>
    %306 = vector.shape_cast %305 : vector<2x8x64xf32> to vector<16x64xf32>
    %307 = arith.truncf %306 : vector<16x64xf32> to vector<16x64xbf16>
    %c0_111 = arith.constant 0 : index
    %c0_112 = arith.constant 0 : index
    %308 = vector.load %arg11[%c0_111, %c0_112] : memref<64x32xbf16, #tpu.memory_space<vmem>>, vector<64x32xbf16>
    %cst_113 = arith.constant dense<0.000000e+00> : vector<16x32xf32>
    %309 = tpu.matmul %307, %308, %cst_113 {dimension_numbers = #tpu.dot_dimension_numbers<[1], [0], [0], [1], [0, 0, 1, 1], [], []>} : vector<16x64xbf16>, vector<64x32xbf16>, vector<16x32xf32> -> vector<16x32xf32>
    %310 = vector.shape_cast %309 : vector<16x32xf32> to vector<2x8x32xf32>
    %311 = arith.addf %0, %310 : vector<2x8x32xf32>
    %c0_114 = arith.constant 0 : index
    %c0_115 = arith.constant 0 : index
    %c0_116 = arith.constant 0 : index
    %312 = vector.load %arg12[%c0_114, %c0_115, %c0_116] : memref<2x8x32xf32, #tpu.memory_space<vmem>>, vector<2x8x32xf32>
    tpu.vector_store %arg12[%c0_114, %c0_115, %c0_116], %311 {strides = array<i32>} : memref<2x8x32xf32, #tpu.memory_space<vmem>>, vector<2x8x32xf32>,
    return
  }
  func.func @transform_0(%arg0: i32) -> (i32, i32, i32) {
    %c0_i32 = arith.constant 0 : i32
    %c0_i32_0 = arith.constant 0 : i32
    %c0_i32_1 = arith.constant 0 : i32
    return %arg0, %c0_i32, %c0_i32_0 : i32, i32, i32
  }
  func.func @transform_1(%arg0: i32) -> (i32, i32) {
    %c0_i32 = arith.constant 0 : i32
    %c0_i32_0 = arith.constant 0 : i32
    %c0_i32_1 = arith.constant 0 : i32
    return %c0_i32, %c0_i32_0 : i32, i32
  }
  func.func @transform_2(%arg0: i32) -> (i32, i32) {
    %c0_i32 = arith.constant 0 : i32
    %c0_i32_0 = arith.constant 0 : i32
    %c0_i32_1 = arith.constant 0 : i32
    return %c0_i32, %c0_i32_0 : i32, i32
  }
  func.func @transform_3(%arg0: i32) -> (i32, i32) {
    %c0_i32 = arith.constant 0 : i32
    %c0_i32_0 = arith.constant 0 : i32
    %c0_i32_1 = arith.constant 0 : i32
    return %c0_i32, %c0_i32_0 : i32, i32
  }
  func.func @transform_4(%arg0: i32) -> (i32, i32) {
    %c0_i32 = arith.constant 0 : i32
    %c0_i32_0 = arith.constant 0 : i32
    %c0_i32_1 = arith.constant 0 : i32
    return %c0_i32, %c0_i32_0 : i32, i32
  }
  func.func @transform_5(%arg0: i32) -> (i32, i32) {
    %c0_i32 = arith.constant 0 : i32
    %c0_i32_0 = arith.constant 0 : i32
    %c0_i32_1 = arith.constant 0 : i32
    return %c0_i32, %c0_i32_0 : i32, i32
  }
  func.func @transform_6(%arg0: i32) -> (i32, i32) {
    %c0_i32 = arith.constant 0 : i32
    %c0_i32_0 = arith.constant 0 : i32
    %c0_i32_1 = arith.constant 0 : i32
    return %c0_i32, %c0_i32_0 : i32, i32
  }
  func.func @transform_7(%arg0: i32) -> (i32, i32) {
    %c0_i32 = arith.constant 0 : i32
    %c0_i32_0 = arith.constant 0 : i32
    %c0_i32_1 = arith.constant 0 : i32
    return %c0_i32, %c0_i32_0 : i32, i32
  }
  func.func @transform_8(%arg0: i32) -> (i32, i32) {
    %c0_i32 = arith.constant 0 : i32
    %c0_i32_0 = arith.constant 0 : i32
    %c0_i32_1 = arith.constant 0 : i32
    return %c0_i32, %c0_i32_0 : i32, i32
  }
  func.func @transform_9(%arg0: i32) -> (i32, i32) {
    %c0_i32 = arith.constant 0 : i32
    %c0_i32_0 = arith.constant 0 : i32
    %c0_i32_1 = arith.constant 0 : i32
    return %c0_i32, %c0_i32_0 : i32, i32
  }
  func.func @transform_10(%arg0: i32) -> (i32, i32) {
    %c0_i32 = arith.constant 0 : i32
    %c0_i32_0 = arith.constant 0 : i32
    %c0_i32_1 = arith.constant 0 : i32
    return %c0_i32, %c0_i32_0 : i32, i32
  }
  func.func @transform_11(%arg0: i32) -> (i32, i32, i32) {
    %c0_i32 = arith.constant 0 : i32
    %c0_i32_0 = arith.constant 0 : i32
    %c0_i32_1 = arith.constant 0 : i32
    return %arg0, %c0_i32, %c0_i32_0 : i32, i32, i32
  }
}

</mosaic_0001>

<llo_original>
// kernel: tpu_custom_call.1
$region0: #{tpu_custom_call.1}
  #allocation0 [shape = 'u32[]', space=smem, size = 0x4, offset = 0x4, fixed_abs, tag = 'smem constant byte address 0x4 - core index']
  #allocation1 [shape = 'u32[144,128]{1,0:T(1,128)}', space=vmem, size = 0x12000, scoped, tag = 'internal scratch']
  %s0 = inlined_call_operand.hbm [shape: f32[8,128], index: 0, kind: input, shape index: {}]
  %s1 = inlined_call_operand.hbm [shape: f32[8,128], index: 1, kind: output, shape index: {}]
  %s2 = sld [smem:[#allocation0]]
  $region18: #{tpu_custom_call.1} parent=0
    _
  %s4 = ssub.s32 1, %s2
  %s5 = scalar_select 0, %s4, %s2
  $region1: #{tpu_custom_call.1} parent=0
    #allocation2 [shape = 'u8[4096]{0}', space=vmem, size = 0x1000, scoped, tag = 'input window, operand 0, single buffered']
    #allocation3 [shape = 's32[1]{0}', space=sflag, size = 0x4, scoped, tag = 'scoped memory for tpu_custom_call.1']
    #allocation4 [shape = 's32[1]{0}', space=sflag, size = 0x4, scoped, tag = 'scoped memory for tpu_custom_call.1']
    #allocation5 [shape = 'u8[4096]{0}', space=vmem, size = 0x1000, scoped, tag = 'output window, operand 0, single buffered']
    %6 = vsyncpa [#allocation3], 0
    %7 = vsyncpa [#allocation4], 0
    // Predicated region
    $region2: #{tpu_custom_call.1} parent=1 // pred_check
      _
    $region3: #{tpu_custom_call.1} parent=1 // pred_check_branch
      %9 = sbr.rel (0) target = $region5
    $region4: #{tpu_custom_call.1} parent=1 // pred_region
      %s11 = ssub.s32 128, 128
      %12 = vsyncadd [#allocation3], %s11
      %s14 = sshll.u32 [#allocation2], 4
      %s15 = int_to_ptr.vmem [resolvable:$true] %s14
      %17 = dma.hbm_to_vmem [thread:$0]  %s0, 128, %s15, [#allocation3]
    $region5: #{tpu_custom_call.1} parent=1 // pred_fallthru
      _
    // Predicated region
    $region6: #{tpu_custom_call.1} parent=1 // pred_check
      _
    $region7: #{tpu_custom_call.1} parent=1 // pred_check_branch
      %19 = sbr.rel (0) target = $region9
    $region8: #{tpu_custom_call.1} parent=1 // pred_region
      %20 = dma.done [#allocation3], 128
    $region9: #{tpu_custom_call.1} parent=1 // pred_fallthru
      _
    %v21 = vld [vmem:[#allocation2] sm:$0xff]
    %22 = vst [vmem:[#allocation5] sm:$0xff] %v21
    // Predicated region
    $region10: #{tpu_custom_call.1} parent=1 // pred_check
      _
    $region11: #{tpu_custom_call.1} parent=1 // pred_check_branch
      %24 = sbr.rel (0) target = $region13
    $region12: #{tpu_custom_call.1} parent=1 // pred_region
      %s26 = ssub.s32 128, 128
      %27 = vsyncadd [#allocation4], %s26
      %s29 = sshll.u32 [#allocation5], 4
      %s30 = int_to_ptr.vmem [resolvable:$true] %s29
      %32 = dma.vmem_to_hbm [thread:$0]  %s30, 128, %s1, [#allocation4]
    $region13: #{tpu_custom_call.1} parent=1 // pred_fallthru
      _
    // Predicated region
    $region14: #{tpu_custom_call.1} parent=1 // pred_check
      _
    $region15: #{tpu_custom_call.1} parent=1 // pred_check_branch
      %34 = sbr.rel (0) target = $region17
    $region16: #{tpu_custom_call.1} parent=1 // pred_region
      %35 = dma.done [#allocation4], 128
    $region17: #{tpu_custom_call.1} parent=1 // pred_fallthru
      _
    %36 = vsyncpa [#allocation3], 1
    %37 = vsyncpa [#allocation4], 1

// kernel: tpu_custom_call.1
$region0: #{tpu_custom_call.1}
  #allocation0 [shape = 'u32[]', space=smem, size = 0x4, offset = 0x4, fixed_abs, tag = 'smem constant byte address 0x4 - core index']
  #allocation1 [shape = 'u32[144,128]{1,0:T(1,128)}', space=vmem, size = 0x12000, scoped, tag = 'internal scratch']
  #allocation2 [shape = 'f32[2,8,64]{2,1,0:T(8,128)}', space=vmem, size = 0x2000, scoped, tag = 'scratch operand']
  #allocation3 [shape = 'f32[2,8,64]{2,1,0:T(8,128)}', space=vmem, size = 0x2000, scoped, tag = 'scratch operand']
  #allocation4 [shape = 'f32[2,8,16]{2,1,0:T(8,128)}', space=vmem, size = 0x2000, scoped, tag = 'scratch operand']
  #allocation5 [shape = 'f32[2,8,16]{2,1,0:T(8,128)}', space=vmem, size = 0x2000, scoped, tag = 'scratch operand']
  #allocation6 [shape = 'f32[2,8,16,64]{3,2,1,0:T(8,128)}', space=vmem, size = 0x20000, scoped, tag = 'scratch operand']
  #allocation7 [shape = 'f32[2,8,64]{2,1,0:T(8,128)}', space=vmem, size = 0x2000, scoped, tag = 'scratch operand']
  #allocation8 [shape = 'f32[2,16,64]{2,1,0:T(8,128)}', space=vmem, size = 0x4000, scoped, tag = 'scratch operand']
  %s0 = inlined_call_operand.vmem [shape: f32[2,8,32], index: 0, kind: input, shape index: {}]
  %s1 = inlined_call_operand.vmem [shape: f32[1,32], index: 1, kind: input, shape index: {}]
  %s2 = inlined_call_operand.vmem [shape: bf16[32,128], index: 2, kind: input, shape index: {}]
  %s3 = inlined_call_operand.vmem [shape: f32[4,64], index: 3, kind: input, shape index: {}]
  %s4 = inlined_call_operand.vmem [shape: f32[1,64], index: 4, kind: input, shape index: {}]
  %s5 = inlined_call_operand.vmem [shape: bf16[64,34], index: 5, kind: input, shape index: {}]
  %s6 = inlined_call_operand.vmem [shape: bf16[2,64], index: 6, kind: input, shape index: {}]
  %s7 = inlined_call_operand.vmem [shape: f32[1,64], index: 7, kind: input, shape index: {}]
  %s8 = inlined_call_operand.vmem [shape: f32[16,64], index: 8, kind: input, shape index: {}]
  %s9 = inlined_call_operand.vmem [shape: f32[1,64], index: 9, kind: input, shape index: {}]
  %s10 = inlined_call_operand.vmem [shape: bf16[64,32], index: 10, kind: input, shape index: {}]
  %s11 = inlined_call_operand.hbm [shape: f32[2,8,32], index: 11, kind: output, shape index: {}]
  %s12 = sld [smem:[#allocation0]]
  $region54: #{tpu_custom_call.1} parent=0
    _
  %s14 = ssub.s32 1, %s12
  %s15 = scalar_select 0, %s14, %s12
  $region1: #{tpu_custom_call.1} parent=0
    #allocation9 [shape = 'u8[8192]{0}', space=vmem, size = 0x2000, scoped, tag = 'output window, operand 0, single buffered']
    #allocation10 [shape = 's32[1]{0}', space=sflag, size = 0x4, scoped, tag = 'scoped memory for tpu_custom_call.1']
    %16 = vsyncpa [#allocation10], 0
    // Predicated region
    $region2: #{tpu_custom_call.1} parent=1 // pred_check
      _
    $region3: #{tpu_custom_call.1} parent=1 // pred_check_branch
      %18 = sbr.rel (0) target = $region5
    $region4: #{tpu_custom_call.1} parent=1 // pred_region
      _
    $region5: #{tpu_custom_call.1} parent=1 // pred_fallthru
      _
    // Predicated region
    $region6: #{tpu_custom_call.1} parent=1 // pred_check
      _
    $region7: #{tpu_custom_call.1} parent=1 // pred_check_branch
      %20 = sbr.rel (0) target = $region9
    $region8: #{tpu_custom_call.1} parent=1 // pred_region
      _
    $region9: #{tpu_custom_call.1} parent=1 // pred_fallthru
      _
    // Predicated region
    $region10: #{tpu_custom_call.1} parent=1 // pred_check
      _
    $region11: #{tpu_custom_call.1} parent=1 // pred_check_branch
      %22 = sbr.rel (0) target = $region13
    $region12: #{tpu_custom_call.1} parent=1 // pred_region
      _
    $region13: #{tpu_custom_call.1} parent=1 // pred_fallthru
      _
    // Predicated region
    $region14: #{tpu_custom_call.1} parent=1 // pred_check
      _
    $region15: #{tpu_custom_call.1} parent=1 // pred_check_branch
      %24 = sbr.rel (0) target = $region17
    $region16: #{tpu_custom_call.1} parent=1 // pred_region
      _
    $region17: #{tpu_custom_call.1} parent=1 // pred_fallthru
      _
    // Predicated region
    $region18: #{tpu_custom_call.1} parent=1 // pred_check
      _
    $region19: #{tpu_custom_call.1} parent=1 // pred_check_branch
      %26 = sbr.rel (0) target = $region21
    $region20: #{tpu_custom_call.1} parent=1 // pred_region
      _
    $region21: #{tpu_custom_call.1} parent=1 // pred_fallthru
      _
    // Predicated region
    $region22: #{tpu_custom_call.1} parent=1 // pred_check
      _
    $region23: #{tpu_custom_call.1} parent=1 // pred_check_branch
      %28 = sbr.rel (0) target = $region25
    $region24: #{tpu_custom_call.1} parent=1 // pred_region
      _
    $region25: #{tpu_custom_call.1} parent=1 // pred_fallthru
      _
    // Predicated region
    $region26: #{tpu_custom_call.1} parent=1 // pred_check
      _
    $region27: #{tpu_custom_call.1} parent=1 // pred_check_branch
      %30 = sbr.rel (0) target = $region29
    $region28: #{tpu_custom_call.1} parent=1 // pred_region
      _
    $region29: #{tpu_custom_call.1} parent=1 // pred_fallthru
      _
    // Predicated region
    $region30: #{tpu_custom_call.1} parent=1 // pred_check
      _
    $region31: #{tpu_custom_call.1} parent=1 // pred_check_branch
      %32 = sbr.rel (0) target = $region33
    $region32: #{tpu_custom_call.1} parent=1 // pred_region
      _
    $region33: #{tpu_custom_call.1} parent=1 // pred_fallthru
      _
    // Predicated region
    $region34: #{tpu_custom_call.1} parent=1 // pred_check
      _
    $region35: #{tpu_custom_call.1} parent=1 // pred_check_branch
      %34 = sbr.rel (0) target = $region37
    $region36: #{tpu_custom_call.1} parent=1 // pred_region
      _
    $region37: #{tpu_custom_call.1} parent=1 // pred_fallthru
      _
    // Predicated region
    $region38: #{tpu_custom_call.1} parent=1 // pred_check
      _
    $region39: #{tpu_custom_call.1} parent=1 // pred_check_branch
      %36 = sbr.rel (0) target = $region41
    $region40: #{tpu_custom_call.1} parent=1 // pred_region
      _
    $region41: #{tpu_custom_call.1} parent=1 // pred_fallthru
      _
    // Predicated region
    $region42: #{tpu_custom_call.1} parent=1 // pred_check
      _
    $region43: #{tpu_custom_call.1} parent=1 // pred_check_branch
      %38 = sbr.rel (0) target = $region45
    $region44: #{tpu_custom_call.1} parent=1 // pred_region
      _
    $region45: #{tpu_custom_call.1} parent=1 // pred_fallthru
      _
    %v40 = vld [vmem:[%s0] sm:$0xff]
    %v41 = vld [vmem:[%s0 + $0x8] sm:$0xff]
    %v42 = vmul.f32 %v40, %v40
    %v43 = vmul.f32 %v41, %v41
    %vm44 = vcmask 261120
    %v45 = vsel %vm44, %v42, 0.0
    %46 = vadd.xlane.f32.xlu0 %v45
    %v47 = vpop.xlane.xlu0 %46
    %v48 = vsel %vm44, %v43, 0.0
    %49 = vadd.xlane.f32.xlu0 %v48
    %v50 = vpop.xlane.xlu0 %49
    %v51 = vrcp.pop 32.0
    %v52 = vmul.f32 %v47, %v51
    %v53 = vmul.f32 %v50, %v51
    %v54 = vadd.f32 %v52, 1e-05
    %v55 = vadd.f32 %v53, 1e-05
    %v56 = vrsqrt.pop %v54
    %v57 = vrsqrt.pop %v55
    %v58 = vmul.f32 %v40, %v56
    %v59 = vmul.f32 %v41, %v57
    %v60 = vld [vmem:[%s1] sm:$0x1]
    %v62 = vlaneseq
    %v63 = vshrl.u32 %v62, 7
    %v64 = vsub.s32 0, %v63
    %v65 = vrot.slane %v60, %v64
    %v67 = vmul.f32 %v58, %v65
    %v68 = vmul.f32 %v59, %v65
    %v69 = vpack.c.bf16 %v68, %v67
    %v70 = vld [vmem:[%s2] sm:$0xf]
    %v71 = vld [vmem:[%s2 + $0x4] sm:$0xf]
    %v72 = vld [vmem:[%s2 + $0x8] sm:$0xf]
    %v73 = vld [vmem:[%s2 + $0xc] sm:$0xf]
    %v78 = vunpack.c.l.b16 %v70
    %v79 = vunpack.c.l.b16 %v71
    %v80 = vunpack.c.l.b16 %v72
    %v81 = vunpack.c.l.b16 %v73
    %v82 = vpack.c.b16 %v79, %v78
    %v83 = vpack.c.b16 %v81, %v80
    %v87 = vsel %vm44, %v69, 0
    %89 = vmatprep.subr.bf16.mxu0 0
    %90 = vmatpush1.bf16.msra.mxu0 0
    %91 = vmatprep.subr.bf16.mxu0 0
    %92 = vmatpush1.bf16.msra.mxu0 0
    %93 = vmatprep.subr.bf16.mxu0 0
    %94 = vmatpush1.bf16.msra.mxu0 0
    %95 = vmatprep.subr.bf16.mxu0 0
    %96 = vmatpush1.bf16.msra.mxu0 0
    %97 = vmatprep.subr.bf16.mxu0 0
    %98 = vmatpush1.bf16.msra.mxu0 0
    %99 = vmatprep.subr.bf16.mxu0 0
    %100 = vmatpush1.bf16.msra.mxu0 0
    %101 = vmatprep.subr.bf16.mxu0 0
    %102 = vmatpush1.bf16.msra.mxu0 %v83
    %103 = vmatprep.subr.bf16.mxu0 0
    %104 = vmatpush1.bf16.msra.mxu0 %v82
    %105 = vmatprep.subr.bf16.mxu0 0
    %106 = vmatpush2.bf16.msra.mxu0 0
    %107 = vmatprep.subr.bf16.mxu0 0
    %108 = vmatpush2.bf16.msra.mxu0 0
    %109 = vmatprep.subr.bf16.mxu0 0
    %110 = vmatpush2.bf16.msra.mxu0 0
    %111 = vmatprep.subr.bf16.mxu0 0
    %112 = vmatpush2.bf16.msra.mxu0 0
    %113 = vmatprep.subr.bf16.mxu0 0
    %114 = vmatpush2.bf16.msra.mxu0 0
    %115 = vmatprep.subr.bf16.mxu0 0
    %116 = vmatpush2.bf16.msra.mxu0 0
    %117 = vmatprep.subr.bf16.mxu0 0
    %118 = vmatpush2.bf16.msra.mxu0 0
    %119 = vmatprep.subr.bf16.mxu0 0
    %120 = vmatpush2.bf16.msra.mxu0 0
    %121 = vmatprep.mubr.bf16.mxu0 0
    %122 = vmatmul.mubr.bf16.gmra.mxu0 %v87
    %v123 = vpop.f32.mrf.mxu0
    %v124 = vadd.f32 0.0, %v123
    %v125 = vpop.f32.mrf.mxu0
    %v126 = vpop.f32.mrf.mxu0
    %v127 = vadd.f32 0.0, %v126
    %v128 = vpop.f32.mrf.mxu0
    %129 = vdwg.mxu0
    %v130 = vld [vmem:[%s3] sm:$0xf]
    %v133 = vrot.slane %v124, 5
    %v134 = vrot.slane %v127, 5
    %vm137 = vcmask 1042432
    %v138 = vsel %vm137, 0.0, %v133
    %v139 = vsel %vm137, 0.0, %v134
    %v140 = vld [vmem:[%s4] sm:$0x1]
    %v141 = vlaneseq
    %v142 = vshrl.u32 %v141, 7
    %v143 = vsub.s32 0, %v142
    %v144 = vrot.slane %v130, %v143
    %v145 = vmul.f32 %v144, %v138
    %v146 = vmul.f32 %v144, %v139
    %v148 = vlaneseq
    %v149 = vshrl.u32 %v148, 7
    %v150 = vsub.s32 0, %v149
    %v151 = vrot.slane %v140, %v150
    %v153 = vadd.f32 %v151, %v145
    %v154 = vadd.f32 %v151, %v146
    %v155 = vlaneseq
    %v156 = vshrl.u32 %v155, 7
    %v157 = vsub.s32 1, %v156
    %v158 = vrot.slane %v130, %v157
    %v159 = vmul.f32 %v158, %v138
    %v160 = vmul.f32 %v158, %v133
    %v161 = vmul.f32 %v158, %v139
    %v162 = vmul.f32 %v158, %v134
    %vm167 = vcmask 1046528
    %v168 = vrot.slane %v159, 1
    %v169 = vrot.slane %v160, 1
    %v170 = vsel %vm167, %v168, %v169
    %v171 = vrot.slane %v161, 1
    %v172 = vrot.slane %v162, 1
    %v173 = vsel %vm167, %v171, %v172
    %v176 = vadd.f32 %v153, %v170
    %v177 = vadd.f32 %v154, %v173
    %v178 = vlaneseq
    %v179 = vshrl.u32 %v178, 7
    %v180 = vsub.s32 2, %v179
    %v181 = vrot.slane %v130, %v180
    %v182 = vmul.f32 %v181, %v138
    %v183 = vmul.f32 %v181, %v133
    %v184 = vmul.f32 %v181, %v139
    %v185 = vmul.f32 %v181, %v134
    %vm190 = vcmask 1045504
    %v191 = vrot.slane %v182, 2
    %v192 = vrot.slane %v183, 2
    %v193 = vsel %vm190, %v191, %v192
    %v194 = vrot.slane %v184, 2
    %v195 = vrot.slane %v185, 2
    %v196 = vsel %vm190, %v194, %v195
    %v199 = vadd.f32 %v176, %v193
    %v200 = vadd.f32 %v177, %v196
    %v201 = vlaneseq
    %v202 = vshrl.u32 %v201, 7
    %v203 = vsub.s32 3, %v202
    %v204 = vrot.slane %v130, %v203
    %v205 = vmul.f32 %v204, %v138
    %v206 = vmul.f32 %v204, %v133
    %v207 = vmul.f32 %v204, %v139
    %v208 = vmul.f32 %v204, %v134
    %vm213 = vcmask 1044480
    %v214 = vrot.slane %v205, 3
    %v215 = vrot.slane %v206, 3
    %v216 = vsel %vm213, %v214, %v215
    %v217 = vrot.slane %v207, 3
    %v218 = vrot.slane %v208, 3
    %v219 = vsel %vm213, %v217, %v218
    %v222 = vadd.f32 %v199, %v216
    %v223 = vadd.f32 %v200, %v219
    %v224 = vand.u32 2147483647, %v222
    %v225 = vand.u32 2147483647, %v223
    %v226 = vsub.f32 0.0, %v224
    %v227 = vsub.f32 0.0, %v225
    %v228 = vmul.f32 %v226, 1.442695
    %v229 = vpow.pop %v228
    %v230 = vmul.f32 %v227, 1.442695
    %v231 = vpow.pop %v230
    %vm232 = vcmp.ge.f32.partialorder %v222, 0.0
    %vm233 = vcmp.ge.f32.partialorder %v223, 0.0
    %v234 = vadd.f32 %v229, 1.0
    %v235 = vadd.f32 %v231, 1.0
    %v236 = vrcp.pop %v234
    %v237 = vmul.f32 1.0, %v236
    %v238 = vrcp.pop %v235
    %v239 = vmul.f32 1.0, %v238
    %v240 = vmul.f32 %v229, %v236
    %v241 = vmul.f32 %v231, %v238
    %v242 = vsel %vm232, %v237, %v240
    %v243 = vsel %vm233, %v239, %v241
    %v244 = vmul.f32 %v222, %v242
    %v245 = vmul.f32 %v223, %v243
    %v246 = vpack.c.bf16 %v245, %v244
    %v247 = vld [vmem:[%s5] sm:$0xf]
    %v248 = vld [vmem:[%s5 + $0x4] sm:$0xf]
    %v249 = vld [vmem:[%s5 + $0x8] sm:$0xf]
    %v250 = vld [vmem:[%s5 + $0xc] sm:$0xf]
    %v251 = vld [vmem:[%s5 + $0x10] sm:$0xf]
    %v252 = vld [vmem:[%s5 + $0x14] sm:$0xf]
    %v253 = vld [vmem:[%s5 + $0x18] sm:$0xf]
    %v254 = vld [vmem:[%s5 + $0x1c] sm:$0xf]
    %v263 = vunpack.c.l.b16 %v247
    %v264 = vunpack.c.l.b16 %v248
    %v265 = vunpack.c.l.b16 %v249
    %v266 = vunpack.c.l.b16 %v250
    %v267 = vunpack.c.l.b16 %v251
    %v268 = vunpack.c.l.b16 %v252
    %v269 = vunpack.c.l.b16 %v253
    %v270 = vunpack.c.l.b16 %v254
    %v271 = vpack.c.b16 %v264, %v263
    %v272 = vpack.c.b16 %v266, %v265
    %v273 = vpack.c.b16 %v268, %v267
    %v274 = vpack.c.b16 %v270, %v269
    %vm279 = vcmask 523264
    %v281 = vsel %vm279, %v246, 0
    %283 = vmatprep.subr.bf16.mxu0 0
    %284 = vmatpush1.bf16.msra.mxu0 0
    %285 = vmatprep.subr.bf16.mxu0 0
    %286 = vmatpush1.bf16.msra.mxu0 0
    %287 = vmatprep.subr.bf16.mxu0 0
    %288 = vmatpush1.bf16.msra.mxu0 0
    %289 = vmatprep.subr.bf16.mxu0 0
    %290 = vmatpush1.bf16.msra.mxu0 0
    %291 = vmatprep.subr.bf16.mxu0 0
    %292 = vmatpush1.bf16.msra.mxu0 %v274
    %293 = vmatprep.subr.bf16.mxu0 0
    %294 = vmatpush1.bf16.msra.mxu0 %v273
    %295 = vmatprep.subr.bf16.mxu0 0
    %296 = vmatpush1.bf16.msra.mxu0 %v272
    %297 = vmatprep.subr.bf16.mxu0 0
    %298 = vmatpush1.bf16.msra.mxu0 %v271
    %299 = vmatprep.subr.bf16.mxu0 0
    %300 = vmatpush2.bf16.msra.mxu0 0
    %301 = vmatprep.subr.bf16.mxu0 0
    %302 = vmatpush2.bf16.msra.mxu0 0
    %303 = vmatprep.subr.bf16.mxu0 0
    %304 = vmatpush2.bf16.msra.mxu0 0
    %305 = vmatprep.subr.bf16.mxu0 0
    %306 = vmatpush2.bf16.msra.mxu0 0
    %307 = vmatprep.subr.bf16.mxu0 0
    %308 = vmatpush2.bf16.msra.mxu0 0
    %309 = vmatprep.subr.bf16.mxu0 0
    %310 = vmatpush2.bf16.msra.mxu0 0
    %311 = vmatprep.subr.bf16.mxu0 0
    %312 = vmatpush2.bf16.msra.mxu0 0
    %313 = vmatprep.subr.bf16.mxu0 0
    %314 = vmatpush2.bf16.msra.mxu0 0
    %315 = vmatprep.mubr.bf16.mxu0 0
    %316 = vmatmul.mubr.bf16.gmra.mxu0 %v281
    %v317 = vpop.f32.mrf.mxu0
    %v318 = vadd.f32 0.0, %v317
    %v319 = vpop.f32.mrf.mxu0
    %v320 = vpop.f32.mrf.mxu0
    %v321 = vadd.f32 0.0, %v320
    %v322 = vpop.f32.mrf.mxu0
    %323 = vdwg.mxu0
    %v324 = vpack.c.bf16 %v321, %v318
    %v325 = vld [vmem:[%s6] sm:$0x1]
    %v326 = vld [vmem:[%s7] sm:$0x1]
    %v328 = vlaneseq
    %v329 = vshrl.u32 %v328, 7
    %v330 = vsub.s32 0, %v329
    %v331 = vrot.slane %v326, %v330
    %vm333 = vcmask 15360
    %v335 = vsel %vm333, %v324, 0
    %vm337 = vcmask 1040384
    %v339 = vsel %vm337, %v325, 0
    %341 = vmatprep.subr.bf16.mxu0 0
    %342 = vmatpush1.bf16.msra.mxu0 0
    %343 = vmatprep.subr.bf16.mxu0 0
    %344 = vmatpush1.bf16.msra.mxu0 0
    %345 = vmatprep.subr.bf16.mxu0 0
    %346 = vmatpush1.bf16.msra.mxu0 0
    %347 = vmatprep.subr.bf16.mxu0 0
    %348 = vmatpush1.bf16.msra.mxu0 0
    %349 = vmatprep.subr.bf16.mxu0 0
    %350 = vmatpush1.bf16.msra.mxu0 0
    %351 = vmatprep.subr.bf16.mxu0 0
    %352 = vmatpush1.bf16.msra.mxu0 0
    %353 = vmatprep.subr.bf16.mxu0 0
    %354 = vmatpush1.bf16.msra.mxu0 0
    %355 = vmatprep.subr.bf16.mxu0 0
    %356 = vmatpush1.bf16.msra.mxu0 %v339
    %357 = vmatprep.subr.bf16.mxu0 0
    %358 = vmatpush2.bf16.msra.mxu0 0
    %359 = vmatprep.subr.bf16.mxu0 0
    %360 = vmatpush2.bf16.msra.mxu0 0
    %361 = vmatprep.subr.bf16.mxu0 0
    %362 = vmatpush2.bf16.msra.mxu0 0
    %363 = vmatprep.subr.bf16.mxu0 0
    %364 = vmatpush2.bf16.msra.mxu0 0
    %365 = vmatprep.subr.bf16.mxu0 0
    %366 = vmatpush2.bf16.msra.mxu0 0
    %367 = vmatprep.subr.bf16.mxu0 0
    %368 = vmatpush2.bf16.msra.mxu0 0
    %369 = vmatprep.subr.bf16.mxu0 0
    %370 = vmatpush2.bf16.msra.mxu0 0
    %371 = vmatprep.subr.bf16.mxu0 0
    %372 = vmatpush2.bf16.msra.mxu0 0
    %373 = vmatprep.mubr.bf16.mxu0 0
    %374 = vmatmul.mubr.bf16.gmra.mxu0 %v335
    %v375 = vpop.f32.mrf.mxu0
    %v376 = vadd.f32 %v331, %v375
    %v377 = vpop.f32.mrf.mxu0
    %v378 = vpop.f32.mrf.mxu0
    %v379 = vadd.f32 %v331, %v378
    %v380 = vpop.f32.mrf.mxu0
    %381 = vdwg.mxu0
    %v382 = vmax.f32 %v376, 0.0
    %v383 = vmax.f32 %v379, 0.0
    %v384 = vand.u32 2147483647, %v376
    %v385 = vand.u32 2147483647, %v379
    %v386 = vsub.f32 0.0, %v384
    %v387 = vsub.f32 0.0, %v385
    %v388 = vmul.f32 %v386, 1.442695
    %v389 = vpow.pop %v388
    %v390 = vmul.f32 %v387, 1.442695
    %v391 = vpow.pop %v390
    %v392 = vadd.f32 %v389, 1.0
    %v393 = vadd.f32 %v391, 1.0
    %v394 = vlog2.pop %v392
    %v395 = vmul.f32 %v394, 0.6931472
    %v396 = vlog2.pop %v393
    %v397 = vmul.f32 %v396, 0.6931472
    %v398 = vadd.f32 %v382, %v395
    %v399 = vadd.f32 %v383, %v397
    %400 = vst.msk [vmem:[#allocation2] sm:$0xff] %vm279, %v398
    %401 = vst.msk [vmem:[#allocation2 + $0x8] sm:$0xff] %vm279, %v399
    %v402 = vmul.f32 %v398, %v244
    %v403 = vmul.f32 %v399, %v245
    %404 = vst.msk [vmem:[#allocation3] sm:$0xff] %vm279, %v402
    %405 = vst.msk [vmem:[#allocation3 + $0x8] sm:$0xff] %vm279, %v403
    %408 = vrot.lane.b32.xlu0 %v318, 126
    %v409 = vpop.permute.xlu0 %408
    %410 = vrot.lane.b32.xlu0 %v321, 126
    %v411 = vpop.permute.xlu0 %410
    %vm414 = vcmask 130048
    %415 = vst.msk [vmem:[#allocation4] sm:$0xff] %vm414, %v409
    %416 = vst.msk [vmem:[#allocation4 + $0x8] sm:$0xff] %vm414, %v411
    %417 = vrot.lane.b32.xlu0 %v318, 110
    %v418 = vpop.permute.xlu0 %417
    %419 = vrot.lane.b32.xlu0 %v321, 110
    %v420 = vpop.permute.xlu0 %419
    %423 = vst.msk [vmem:[#allocation5] sm:$0xff] %vm414, %v418
    %424 = vst.msk [vmem:[#allocation5 + $0x8] sm:$0xff] %vm414, %v420
    %425 = vst.msk [vmem:[#allocation8] sm:$0xff] %vm279, 0.0
    %426 = vst.msk [vmem:[#allocation8 + $0x8] sm:$0xff] %vm279, 0.0
    %427 = vst.msk [vmem:[#allocation8 + $0x10] sm:$0xff] %vm279, 0.0
    %428 = vst.msk [vmem:[#allocation8 + $0x18] sm:$0xff] %vm279, 0.0
    %v429 = vld [vmem:[%s8] sm:$0xff]
    %v430 = vld [vmem:[%s8 + $0x8] sm:$0xff]
    %v431 = vld [vmem:[#allocation2] sm:$0xff]
    %v432 = vld [vmem:[#allocation2 + $0x8] sm:$0xff]
    %v435 = vcombine.high %v431, %v431
    %v437 = vunpack.c.l.s4 1966171168
    %v438 = vunpack.c.0.s8 %v437
    %v439 = vlaneseq
    %v440 = vshrl.u32 %v439, 7
    %v441 = vsub.s32 %v438, %v440
    %v442 = vrot.slane %v431, %v441
    %v444 = vunpack.c.l.s4 1966171168
    %v445 = vunpack.c.0.s8 %v444
    %v446 = vlaneseq
    %v447 = vshrl.u32 %v446, 7
    %v448 = vsub.s32 %v445, %v447
    %v449 = vrot.slane %v435, %v448
    %v450 = vcombine.high %v442, %v442
    %v451 = vcombine.high %v449, %v449
    %v453 = vunpack.c.l.s4 1966171168
    %v454 = vunpack.c.0.s8 %v453
    %v455 = vlaneseq
    %v456 = vshrl.u32 %v455, 7
    %v457 = vsub.s32 %v454, %v456
    %v458 = vrot.slane %v442, %v457
    %v460 = vunpack.c.l.s4 1966171168
    %v461 = vunpack.c.0.s8 %v460
    %v462 = vlaneseq
    %v463 = vshrl.u32 %v462, 7
    %v464 = vsub.s32 %v461, %v463
    %v465 = vrot.slane %v449, %v464
    %v467 = vunpack.c.l.s4 1966171168
    %v468 = vunpack.c.0.s8 %v467
    %v469 = vlaneseq
    %v470 = vshrl.u32 %v469, 7
    %v471 = vsub.s32 %v468, %v470
    %v472 = vrot.slane %v450, %v471
    %v474 = vunpack.c.l.s4 1966171168
    %v475 = vunpack.c.0.s8 %v474
    %v476 = vlaneseq
    %v477 = vshrl.u32 %v476, 7
    %v478 = vsub.s32 %v475, %v477
    %v479 = vrot.slane %v451, %v478
    %v480 = vcombine.high %v458, %v458
    %v481 = vcombine.high %v465, %v465
    %v482 = vcombine.high %v472, %v472
    %v483 = vcombine.high %v479, %v479
    %v484 = vcombine.high %v432, %v432
    %v486 = vunpack.c.l.s4 1966171168
    %v487 = vunpack.c.0.s8 %v486
    %v488 = vlaneseq
    %v489 = vshrl.u32 %v488, 7
    %v490 = vsub.s32 %v487, %v489
    %v491 = vrot.slane %v432, %v490
    %v493 = vunpack.c.l.s4 1966171168
    %v494 = vunpack.c.0.s8 %v493
    %v495 = vlaneseq
    %v496 = vshrl.u32 %v495, 7
    %v497 = vsub.s32 %v494, %v496
    %v498 = vrot.slane %v484, %v497
    %v499 = vcombine.high %v491, %v491
    %v500 = vcombine.high %v498, %v498
    %v502 = vunpack.c.l.s4 1966171168
    %v503 = vunpack.c.0.s8 %v502
    %v504 = vlaneseq
    %v505 = vshrl.u32 %v504, 7
    %v506 = vsub.s32 %v503, %v505
    %v507 = vrot.slane %v491, %v506
    %v509 = vunpack.c.l.s4 1966171168
    %v510 = vunpack.c.0.s8 %v509
    %v511 = vlaneseq
    %v512 = vshrl.u32 %v511, 7
    %v513 = vsub.s32 %v510, %v512
    %v514 = vrot.slane %v498, %v513
    %v516 = vunpack.c.l.s4 1966171168
    %v517 = vunpack.c.0.s8 %v516
    %v518 = vlaneseq
    %v519 = vshrl.u32 %v518, 7
    %v520 = vsub.s32 %v517, %v519
    %v521 = vrot.slane %v499, %v520
    %v523 = vunpack.c.l.s4 1966171168
    %v524 = vunpack.c.0.s8 %v523
    %v525 = vlaneseq
    %v526 = vshrl.u32 %v525, 7
    %v527 = vsub.s32 %v524, %v526
    %v528 = vrot.slane %v500, %v527
    %v529 = vcombine.high %v507, %v507
    %v530 = vcombine.high %v514, %v514
    %v531 = vcombine.high %v521, %v521
    %v532 = vcombine.high %v528, %v528
    %v533 = vlaneseq
    %v534 = vshrl.u32 %v533, 7
    %v535 = vsub.s32 0, %v534
    %v536 = vrot.slane %v458, %v535
    %v537 = vlaneseq
    %v538 = vshrl.u32 %v537, 7
    %v539 = vsub.s32 0, %v538
    %v540 = vrot.slane %v472, %v539
    %v541 = vlaneseq
    %v542 = vshrl.u32 %v541, 7
    %v543 = vsub.s32 0, %v542
    %v544 = vrot.slane %v480, %v543
    %v545 = vlaneseq
    %v546 = vshrl.u32 %v545, 7
    %v547 = vsub.s32 0, %v546
    %v548 = vrot.slane %v482, %v547
    %v549 = vlaneseq
    %v550 = vshrl.u32 %v549, 7
    %v551 = vsub.s32 0, %v550
    %v552 = vrot.slane %v465, %v551
    %v553 = vlaneseq
    %v554 = vshrl.u32 %v553, 7
    %v555 = vsub.s32 0, %v554
    %v556 = vrot.slane %v479, %v555
    %v557 = vlaneseq
    %v558 = vshrl.u32 %v557, 7
    %v559 = vsub.s32 0, %v558
    %v560 = vrot.slane %v481, %v559
    %v561 = vlaneseq
    %v562 = vshrl.u32 %v561, 7
    %v563 = vsub.s32 0, %v562
    %v564 = vrot.slane %v483, %v563
    %v565 = vlaneseq
    %v566 = vshrl.u32 %v565, 7
    %v567 = vsub.s32 0, %v566
    %v568 = vrot.slane %v507, %v567
    %v569 = vlaneseq
    %v570 = vshrl.u32 %v569, 7
    %v571 = vsub.s32 0, %v570
    %v572 = vrot.slane %v521, %v571
    %v573 = vlaneseq
    %v574 = vshrl.u32 %v573, 7
    %v575 = vsub.s32 0, %v574
    %v576 = vrot.slane %v529, %v575
    %v577 = vlaneseq
    %v578 = vshrl.u32 %v577, 7
    %v579 = vsub.s32 0, %v578
    %v580 = vrot.slane %v531, %v579
    %v581 = vlaneseq
    %v582 = vshrl.u32 %v581, 7
    %v583 = vsub.s32 0, %v582
    %v584 = vrot.slane %v514, %v583
    %v585 = vlaneseq
    %v586 = vshrl.u32 %v585, 7
    %v587 = vsub.s32 0, %v586
    %v588 = vrot.slane %v528, %v587
    %v589 = vlaneseq
    %v590 = vshrl.u32 %v589, 7
    %v591 = vsub.s32 0, %v590
    %v592 = vrot.slane %v530, %v591
    %v593 = vlaneseq
    %v594 = vshrl.u32 %v593, 7
    %v595 = vsub.s32 0, %v594
    %v596 = vrot.slane %v532, %v595
    %v613 = vmul.f32 %v536, %v429
    %v614 = vmul.f32 %v536, %v430
    %v615 = vmul.f32 %v540, %v429
    %v616 = vmul.f32 %v540, %v430
    %v617 = vmul.f32 %v544, %v429
    %v618 = vmul.f32 %v544, %v430
    %v619 = vmul.f32 %v548, %v429
    %v620 = vmul.f32 %v548, %v430
    %v621 = vmul.f32 %v552, %v429
    %v622 = vmul.f32 %v552, %v430
    %v623 = vmul.f32 %v556, %v429
    %v624 = vmul.f32 %v556, %v430
    %v625 = vmul.f32 %v560, %v429
    %v626 = vmul.f32 %v560, %v430
    %v627 = vmul.f32 %v564, %v429
    %v628 = vmul.f32 %v564, %v430
    %v629 = vmul.f32 %v568, %v429
    %v630 = vmul.f32 %v568, %v430
    %v631 = vmul.f32 %v572, %v429
    %v632 = vmul.f32 %v572, %v430
    %v633 = vmul.f32 %v576, %v429
    %v634 = vmul.f32 %v576, %v430
    %v635 = vmul.f32 %v580, %v429
    %v636 = vmul.f32 %v580, %v430
    %v637 = vmul.f32 %v584, %v429
    %v638 = vmul.f32 %v584, %v430
    %v639 = vmul.f32 %v588, %v429
    %v640 = vmul.f32 %v588, %v430
    %v641 = vmul.f32 %v592, %v429
    %v642 = vmul.f32 %v592, %v430
    %v643 = vmul.f32 %v596, %v429
    %v644 = vmul.f32 %v596, %v430
    %v645 = vmul.f32 %v613, 1.442695
    %v646 = vpow.pop %v645
    %v647 = vmul.f32 %v614, 1.442695
    %v648 = vpow.pop %v647
    %v649 = vmul.f32 %v615, 1.442695
    %v650 = vpow.pop %v649
    %v651 = vmul.f32 %v616, 1.442695
    %v652 = vpow.pop %v651
    %v653 = vmul.f32 %v617, 1.442695
    %v654 = vpow.pop %v653
    %v655 = vmul.f32 %v618, 1.442695
    %v656 = vpow.pop %v655
    %v657 = vmul.f32 %v619, 1.442695
    %v658 = vpow.pop %v657
    %v659 = vmul.f32 %v620, 1.442695
    %v660 = vpow.pop %v659
    %v661 = vmul.f32 %v621, 1.442695
    %v662 = vpow.pop %v661
    %v663 = vmul.f32 %v622, 1.442695
    %v664 = vpow.pop %v663
    %v665 = vmul.f32 %v623, 1.442695
    %v666 = vpow.pop %v665
    %v667 = vmul.f32 %v624, 1.442695
    %v668 = vpow.pop %v667
    %v669 = vmul.f32 %v625, 1.442695
    %v670 = vpow.pop %v669
    %v671 = vmul.f32 %v626, 1.442695
    %v672 = vpow.pop %v671
    %v673 = vmul.f32 %v627, 1.442695
    %v674 = vpow.pop %v673
    %v675 = vmul.f32 %v628, 1.442695
    %v676 = vpow.pop %v675
    %v677 = vmul.f32 %v629, 1.442695
    %v678 = vpow.pop %v677
    %v679 = vmul.f32 %v630, 1.442695
    %v680 = vpow.pop %v679
    %v681 = vmul.f32 %v631, 1.442695
    %v682 = vpow.pop %v681
    %v683 = vmul.f32 %v632, 1.442695
    %v684 = vpow.pop %v683
    %v685 = vmul.f32 %v633, 1.442695
    %v686 = vpow.pop %v685
    %v687 = vmul.f32 %v634, 1.442695
    %v688 = vpow.pop %v687
    %v689 = vmul.f32 %v635, 1.442695
    %v690 = vpow.pop %v689
    %v691 = vmul.f32 %v636, 1.442695
    %v692 = vpow.pop %v691
    %v693 = vmul.f32 %v637, 1.442695
    %v694 = vpow.pop %v693
    %v695 = vmul.f32 %v638, 1.442695
    %v696 = vpow.pop %v695
    %v697 = vmul.f32 %v639, 1.442695
    %v698 = vpow.pop %v697
    %v699 = vmul.f32 %v640, 1.442695
    %v700 = vpow.pop %v699
    %v701 = vmul.f32 %v641, 1.442695
    %v702 = vpow.pop %v701
    %v703 = vmul.f32 %v642, 1.442695
    %v704 = vpow.pop %v703
    %v705 = vmul.f32 %v643, 1.442695
    %v706 = vpow.pop %v705
    %v707 = vmul.f32 %v644, 1.442695
    %v708 = vpow.pop %v707
    %709 = vst.msk [vmem:[#allocation6] sm:$0xff] %vm279, %v646
    %710 = vst.msk [vmem:[#allocation6 + $0x8] sm:$0xff] %vm279, %v648
    %711 = vst.msk [vmem:[#allocation6 + $0x10] sm:$0xff] %vm279, %v650
    %712 = vst.msk [vmem:[#allocation6 + $0x18] sm:$0xff] %vm279, %v652
    %713 = vst.msk [vmem:[#allocation6 + $0x20] sm:$0xff] %vm279, %v654
    %714 = vst.msk [vmem:[#allocation6 + $0x28] sm:$0xff] %vm279, %v656
    %715 = vst.msk [vmem:[#allocation6 + $0x30] sm:$0xff] %vm279, %v658
    %716 = vst.msk [vmem:[#allocation6 + $0x38] sm:$0xff] %vm279, %v660
    %717 = vst.msk [vmem:[#allocation6 + $0x40] sm:$0xff] %vm279, %v662
    %718 = vst.msk [vmem:[#allocation6 + $0x48] sm:$0xff] %vm279, %v664
    %719 = vst.msk [vmem:[#allocation6 + $0x50] sm:$0xff] %vm279, %v666
    %720 = vst.msk [vmem:[#allocation6 + $0x58] sm:$0xff] %vm279, %v668
    %721 = vst.msk [vmem:[#allocation6 + $0x60] sm:$0xff] %vm279, %v670
    %722 = vst.msk [vmem:[#allocation6 + $0x68] sm:$0xff] %vm279, %v672
    %723 = vst.msk [vmem:[#allocation6 + $0x70] sm:$0xff] %vm279, %v674
    %724 = vst.msk [vmem:[#allocation6 + $0x78] sm:$0xff] %vm279, %v676
    %725 = vst.msk [vmem:[#allocation6 + $0x80] sm:$0xff] %vm279, %v678
    %726 = vst.msk [vmem:[#allocation6 + $0x88] sm:$0xff] %vm279, %v680
    %727 = vst.msk [vmem:[#allocation6 + $0x90] sm:$0xff] %vm279, %v682
    %728 = vst.msk [vmem:[#allocation6 + $0x98] sm:$0xff] %vm279, %v684
    %729 = vst.msk [vmem:[#allocation6 + $0xa0] sm:$0xff] %vm279, %v686
    %730 = vst.msk [vmem:[#allocation6 + $0xa8] sm:$0xff] %vm279, %v688
    %731 = vst.msk [vmem:[#allocation6 + $0xb0] sm:$0xff] %vm279, %v690
    %732 = vst.msk [vmem:[#allocation6 + $0xb8] sm:$0xff] %vm279, %v692
    %733 = vst.msk [vmem:[#allocation6 + $0xc0] sm:$0xff] %vm279, %v694
    %734 = vst.msk [vmem:[#allocation6 + $0xc8] sm:$0xff] %vm279, %v696
    %735 = vst.msk [vmem:[#allocation6 + $0xd0] sm:$0xff] %vm279, %v698
    %736 = vst.msk [vmem:[#allocation6 + $0xd8] sm:$0xff] %vm279, %v700
    %737 = vst.msk [vmem:[#allocation6 + $0xe0] sm:$0xff] %vm279, %v702
    %738 = vst.msk [vmem:[#allocation6 + $0xe8] sm:$0xff] %vm279, %v704
    %739 = vst.msk [vmem:[#allocation6 + $0xf0] sm:$0xff] %vm279, %v706
    %740 = vst.msk [vmem:[#allocation6 + $0xf8] sm:$0xff] %vm279, %v708
    %v741 = vld [vmem:[#allocation3] sm:$0xff]
    %v742 = vld [vmem:[#allocation3 + $0x8] sm:$0xff]
    %v743 = vld [vmem:[#allocation4] sm:$0xff]
    %v744 = vld [vmem:[#allocation4 + $0x8] sm:$0xff]
    %v745 = vld [vmem:[#allocation5] sm:$0xff]
    %v746 = vld [vmem:[#allocation5 + $0x8] sm:$0xff]
    %v747 = vld [vmem:[#allocation8] sm:$0xff]
    %v748 = vld [vmem:[#allocation8 + $0x8] sm:$0xff]
    %v749 = vld [vmem:[#allocation8 + $0x10] sm:$0xff]
    %v750 = vld [vmem:[#allocation8 + $0x18] sm:$0xff]
    %v751 = vld [vmem:[#allocation6] sm:$0xff]
    %v752 = vld [vmem:[#allocation6 + $0x8] sm:$0xff]
    %v753 = vld [vmem:[#allocation6 + $0x80] sm:$0xff]
    %v754 = vld [vmem:[#allocation6 + $0x88] sm:$0xff]
    %v755 = vmul.f32 %v751, %v747
    %v756 = vmul.f32 %v752, %v748
    %v757 = vmul.f32 %v753, %v749
    %v758 = vmul.f32 %v754, %v750
    %v759 = vlaneseq
    %v760 = vshrl.u32 %v759, 7
    %v761 = vsub.s32 0, %v760
    %v762 = vrot.slane %v743, %v761
    %764 = vbcast.lane.b32.xlu0 %v762, 256
    %v765 = vpop.permute.xlu0 %764
    %s767 = sor.u32 256, 8
    %768 = vbcast.lane.b32.xlu0 %v762, %s767
    %v769 = vpop.permute.xlu0 %768
    %v770 = vlaneseq
    %v771 = vshrl.u32 %v770, 7
    %v772 = vsub.s32 0, %v771
    %v773 = vrot.slane %v744, %v772
    %775 = vbcast.lane.b32.xlu0 %v773, 256
    %v776 = vpop.permute.xlu0 %775
    %s778 = sor.u32 256, 8
    %779 = vbcast.lane.b32.xlu0 %v773, %s778
    %v780 = vpop.permute.xlu0 %779
    %v781 = vlaneseq
    %v782 = vshrl.u32 %v781, 7
    %v783 = vsub.s32 0, %v782
    %v784 = vrot.slane %v741, %v783
    %v785 = vlaneseq
    %v786 = vshrl.u32 %v785, 7
    %v787 = vsub.s32 0, %v786
    %v788 = vrot.slane %v742, %v787
    %v789 = vmul.f32 %v765, %v784
    %v790 = vmul.f32 %v769, %v784
    %v791 = vmul.f32 %v776, %v788
    %v792 = vmul.f32 %v780, %v788
    %v793 = vadd.f32 %v755, %v789
    %v794 = vadd.f32 %v756, %v790
    %v795 = vadd.f32 %v757, %v791
    %v796 = vadd.f32 %v758, %v792
    %v797 = vlaneseq
    %v798 = vshrl.u32 %v797, 7
    %v799 = vsub.s32 0, %v798
    %v800 = vrot.slane %v745, %v799
    %802 = vbcast.lane.b32.xlu0 %v800, 256
    %v803 = vpop.permute.xlu0 %802
    %s805 = sor.u32 256, 8
    %806 = vbcast.lane.b32.xlu0 %v800, %s805
    %v807 = vpop.permute.xlu0 %806
    %v808 = vlaneseq
    %v809 = vshrl.u32 %v808, 7
    %v810 = vsub.s32 0, %v809
    %v811 = vrot.slane %v746, %v810
    %813 = vbcast.lane.b32.xlu0 %v811, 256
    %v814 = vpop.permute.xlu0 %813
    %s816 = sor.u32 256, 8
    %817 = vbcast.lane.b32.xlu0 %v811, %s816
    %v818 = vpop.permute.xlu0 %817
    %v819 = vmul.f32 %v793, %v803
    %v820 = vmul.f32 %v794, %v807
    %v821 = vmul.f32 %v795, %v814
    %v822 = vmul.f32 %v796, %v818
    %v823 = vsel %vm279, %v819, 0.0
    %v824 = vsel %vm279, %v820, 0.0
    %v825 = vadd.f32 %v823, %v824
    %v826 = vrot.slane %v825, 4
    %v827 = vadd.f32 %v825, %v826
    %v828 = vrot.slane %v827, 2
    %v829 = vadd.f32 %v827, %v828
    %v830 = vrot.slane %v829, 1
    %v831 = vadd.f32 %v829, %v830
    %v832 = vsel %vm279, %v821, 0.0
    %v833 = vsel %vm279, %v822, 0.0
    %v834 = vadd.f32 %v832, %v833
    %v835 = vrot.slane %v834, 4
    %v836 = vadd.f32 %v834, %v835
    %v837 = vrot.slane %v836, 2
    %v838 = vadd.f32 %v836, %v837
    %v839 = vrot.slane %v838, 1
    %v840 = vadd.f32 %v838, %v839
    %s841 = scalar_lea.vmem [#allocation6], 16
    %v842 = vld [vmem:[%s841] sm:$0xff]
    %v843 = vld [vmem:[%s841 + $0x8] sm:$0xff]
    %v844 = vld [vmem:[%s841 + $0x80] sm:$0xff]
    %v845 = vld [vmem:[%s841 + $0x88] sm:$0xff]
    %v846 = vmul.f32 %v842, %v793
    %v847 = vmul.f32 %v843, %v794
    %v848 = vmul.f32 %v844, %v795
    %v849 = vmul.f32 %v845, %v796
    %v850 = vlaneseq
    %v851 = vshrl.u32 %v850, 7
    %v852 = vsub.s32 1, %v851
    %v853 = vrot.slane %v743, %v852
    %855 = vbcast.lane.b32.xlu0 %v853, 256
    %v856 = vpop.permute.xlu0 %855
    %s858 = sor.u32 256, 8
    %859 = vbcast.lane.b32.xlu0 %v853, %s858
    %v860 = vpop.permute.xlu0 %859
    %v861 = vlaneseq
    %v862 = vshrl.u32 %v861, 7
    %v863 = vsub.s32 1, %v862
    %v864 = vrot.slane %v744, %v863
    %866 = vbcast.lane.b32.xlu0 %v864, 256
    %v867 = vpop.permute.xlu0 %866
    %s869 = sor.u32 256, 8
    %870 = vbcast.lane.b32.xlu0 %v864, %s869
    %v871 = vpop.permute.xlu0 %870
    %v872 = vlaneseq
    %v873 = vshrl.u32 %v872, 7
    %v874 = vsub.s32 1, %v873
    %v875 = vrot.slane %v741, %v874
    %v876 = vlaneseq
    %v877 = vshrl.u32 %v876, 7
    %v878 = vsub.s32 1, %v877
    %v879 = vrot.slane %v742, %v878
    %v880 = vmul.f32 %v856, %v875
    %v881 = vmul.f32 %v860, %v875
    %v882 = vmul.f32 %v867, %v879
    %v883 = vmul.f32 %v871, %v879
    %v884 = vadd.f32 %v846, %v880
    %v885 = vadd.f32 %v847, %v881
    %v886 = vadd.f32 %v848, %v882
    %v887 = vadd.f32 %v849, %v883
    %v888 = vlaneseq
    %v889 = vshrl.u32 %v888, 7
    %v890 = vsub.s32 1, %v889
    %v891 = vrot.slane %v745, %v890
    %893 = vbcast.lane.b32.xlu0 %v891, 256
    %v894 = vpop.permute.xlu0 %893
    %s896 = sor.u32 256, 8
    %897 = vbcast.lane.b32.xlu0 %v891, %s896
    %v898 = vpop.permute.xlu0 %897
    %v899 = vlaneseq
    %v900 = vshrl.u32 %v899, 7
    %v901 = vsub.s32 1, %v900
    %v902 = vrot.slane %v746, %v901
    %904 = vbcast.lane.b32.xlu0 %v902, 256
    %v905 = vpop.permute.xlu0 %904
    %s907 = sor.u32 256, 8
    %908 = vbcast.lane.b32.xlu0 %v902, %s907
    %v909 = vpop.permute.xlu0 %908
    %v910 = vmul.f32 %v884, %v894
    %v911 = vmul.f32 %v885, %v898
    %v912 = vmul.f32 %v886, %v905
    %v913 = vmul.f32 %v887, %v909
    %v914 = vsel %vm279, %v910, 0.0
    %v915 = vsel %vm279, %v911, 0.0
    %v916 = vadd.f32 %v914, %v915
    %v917 = vrot.slane %v916, 4
    %v918 = vadd.f32 %v916, %v917
    %v919 = vrot.slane %v918, 2
    %v920 = vadd.f32 %v918, %v919
    %v921 = vrot.slane %v920, 1
    %v922 = vadd.f32 %v920, %v921
    %v923 = vsel %vm279, %v912, 0.0
    %v924 = vsel %vm279, %v913, 0.0
    %v925 = vadd.f32 %v923, %v924
    %v926 = vrot.slane %v925, 4
    %v927 = vadd.f32 %v925, %v926
    %v928 = vrot.slane %v927, 2
    %v929 = vadd.f32 %v927, %v928
    %v930 = vrot.slane %v929, 1
    %v931 = vadd.f32 %v929, %v930
    %s932 = scalar_lea.vmem [#allocation6], 32
    %v933 = vld [vmem:[%s932] sm:$0xff]
    %v934 = vld [vmem:[%s932 + $0x8] sm:$0xff]
    %v935 = vld [vmem:[%s932 + $0x80] sm:$0xff]
    %v936 = vld [vmem:[%s932 + $0x88] sm:$0xff]
    %v937 = vmul.f32 %v933, %v884
    %v938 = vmul.f32 %v934, %v885
    %v939 = vmul.f32 %v935, %v886
    %v940 = vmul.f32 %v936, %v887
    %v941 = vlaneseq
    %v942 = vshrl.u32 %v941, 7
    %v943 = vsub.s32 2, %v942
    %v944 = vrot.slane %v743, %v943
    %946 = vbcast.lane.b32.xlu0 %v944, 256
    %v947 = vpop.permute.xlu0 %946
    %s949 = sor.u32 256, 8
    %950 = vbcast.lane.b32.xlu0 %v944, %s949
    %v951 = vpop.permute.xlu0 %950
    %v952 = vlaneseq
    %v953 = vshrl.u32 %v952, 7
    %v954 = vsub.s32 2, %v953
    %v955 = vrot.slane %v744, %v954
    %957 = vbcast.lane.b32.xlu0 %v955, 256
    %v958 = vpop.permute.xlu0 %957
    %s960 = sor.u32 256, 8
    %961 = vbcast.lane.b32.xlu0 %v955, %s960
    %v962 = vpop.permute.xlu0 %961
    %v963 = vlaneseq
    %v964 = vshrl.u32 %v963, 7
    %v965 = vsub.s32 2, %v964
    %v966 = vrot.slane %v741, %v965
    %v967 = vlaneseq
    %v968 = vshrl.u32 %v967, 7
    %v969 = vsub.s32 2, %v968
    %v970 = vrot.slane %v742, %v969
    %v971 = vmul.f32 %v947, %v966
    %v972 = vmul.f32 %v951, %v966
    %v973 = vmul.f32 %v958, %v970
    %v974 = vmul.f32 %v962, %v970
    %v975 = vadd.f32 %v937, %v971
    %v976 = vadd.f32 %v938, %v972
    %v977 = vadd.f32 %v939, %v973
    %v978 = vadd.f32 %v940, %v974
    %v979 = vlaneseq
    %v980 = vshrl.u32 %v979, 7
    %v981 = vsub.s32 2, %v980
    %v982 = vrot.slane %v745, %v981
    %984 = vbcast.lane.b32.xlu0 %v982, 256
    %v985 = vpop.permute.xlu0 %984
    %s987 = sor.u32 256, 8
    %988 = vbcast.lane.b32.xlu0 %v982, %s987
    %v989 = vpop.permute.xlu0 %988
    %v990 = vlaneseq
    %v991 = vshrl.u32 %v990, 7
    %v992 = vsub.s32 2, %v991
    %v993 = vrot.slane %v746, %v992
    %995 = vbcast.lane.b32.xlu0 %v993, 256
    %v996 = vpop.permute.xlu0 %995
    %s998 = sor.u32 256, 8
    %999 = vbcast.lane.b32.xlu0 %v993, %s998
    %v1000 = vpop.permute.xlu0 %999
    %v1001 = vmul.f32 %v975, %v985
    %v1002 = vmul.f32 %v976, %v989
    %v1003 = vmul.f32 %v977, %v996
    %v1004 = vmul.f32 %v978, %v1000
    %v1005 = vsel %vm279, %v1001, 0.0
    %v1006 = vsel %vm279, %v1002, 0.0
    %v1007 = vadd.f32 %v1005, %v1006
    %v1008 = vrot.slane %v1007, 4
    %v1009 = vadd.f32 %v1007, %v1008
    %v1010 = vrot.slane %v1009, 2
    %v1011 = vadd.f32 %v1009, %v1010
    %v1012 = vrot.slane %v1011, 1
    %v1013 = vadd.f32 %v1011, %v1012
    %v1014 = vsel %vm279, %v1003, 0.0
    %v1015 = vsel %vm279, %v1004, 0.0
    %v1016 = vadd.f32 %v1014, %v1015
    %v1017 = vrot.slane %v1016, 4
    %v1018 = vadd.f32 %v1016, %v1017
    %v1019 = vrot.slane %v1018, 2
    %v1020 = vadd.f32 %v1018, %v1019
    %v1021 = vrot.slane %v1020, 1
    %v1022 = vadd.f32 %v1020, %v1021
    %s1023 = scalar_lea.vmem [#allocation6], 48
    %v1024 = vld [vmem:[%s1023] sm:$0xff]
    %v1025 = vld [vmem:[%s1023 + $0x8] sm:$0xff]
    %v1026 = vld [vmem:[%s1023 + $0x80] sm:$0xff]
    %v1027 = vld [vmem:[%s1023 + $0x88] sm:$0xff]
    %v1028 = vmul.f32 %v1024, %v975
    %v1029 = vmul.f32 %v1025, %v976
    %v1030 = vmul.f32 %v1026, %v977
    %v1031 = vmul.f32 %v1027, %v978
    %v1032 = vlaneseq
    %v1033 = vshrl.u32 %v1032, 7
    %v1034 = vsub.s32 3, %v1033
    %v1035 = vrot.slane %v743, %v1034
    %1037 = vbcast.lane.b32.xlu0 %v1035, 256
    %v1038 = vpop.permute.xlu0 %1037
    %s1040 = sor.u32 256, 8
    %1041 = vbcast.lane.b32.xlu0 %v1035, %s1040
    %v1042 = vpop.permute.xlu0 %1041
    %v1043 = vlaneseq
    %v1044 = vshrl.u32 %v1043, 7
    %v1045 = vsub.s32 3, %v1044
    %v1046 = vrot.slane %v744, %v1045
    %1048 = vbcast.lane.b32.xlu0 %v1046, 256
    %v1049 = vpop.permute.xlu0 %1048
    %s1051 = sor.u32 256, 8
    %1052 = vbcast.lane.b32.xlu0 %v1046, %s1051
    %v1053 = vpop.permute.xlu0 %1052
    %v1054 = vlaneseq
    %v1055 = vshrl.u32 %v1054, 7
    %v1056 = vsub.s32 3, %v1055
    %v1057 = vrot.slane %v741, %v1056
    %v1058 = vlaneseq
    %v1059 = vshrl.u32 %v1058, 7
    %v1060 = vsub.s32 3, %v1059
    %v1061 = vrot.slane %v742, %v1060
    %v1062 = vmul.f32 %v1038, %v1057
    %v1063 = vmul.f32 %v1042, %v1057
    %v1064 = vmul.f32 %v1049, %v1061
    %v1065 = vmul.f32 %v1053, %v1061
    %v1066 = vadd.f32 %v1028, %v1062
    %v1067 = vadd.f32 %v1029, %v1063
    %v1068 = vadd.f32 %v1030, %v1064
    %v1069 = vadd.f32 %v1031, %v1065
    %v1070 = vlaneseq
    %v1071 = vshrl.u32 %v1070, 7
    %v1072 = vsub.s32 3, %v1071
    %v1073 = vrot.slane %v745, %v1072
    %1075 = vbcast.lane.b32.xlu0 %v1073, 256
    %v1076 = vpop.permute.xlu0 %1075
    %s1078 = sor.u32 256, 8
    %1079 = vbcast.lane.b32.xlu0 %v1073, %s1078
    %v1080 = vpop.permute.xlu0 %1079
    %v1081 = vlaneseq
    %v1082 = vshrl.u32 %v1081, 7
    %v1083 = vsub.s32 3, %v1082
    %v1084 = vrot.slane %v746, %v1083
    %1086 = vbcast.lane.b32.xlu0 %v1084, 256
    %v1087 = vpop.permute.xlu0 %1086
    %s1089 = sor.u32 256, 8
    %1090 = vbcast.lane.b32.xlu0 %v1084, %s1089
    %v1091 = vpop.permute.xlu0 %1090
    %v1092 = vmul.f32 %v1066, %v1076
    %v1093 = vmul.f32 %v1067, %v1080
    %v1094 = vmul.f32 %v1068, %v1087
    %v1095 = vmul.f32 %v1069, %v1091
    %v1096 = vsel %vm279, %v1092, 0.0
    %v1097 = vsel %vm279, %v1093, 0.0
    %v1098 = vadd.f32 %v1096, %v1097
    %v1099 = vrot.slane %v1098, 4
    %v1100 = vadd.f32 %v1098, %v1099
    %v1101 = vrot.slane %v1100, 2
    %v1102 = vadd.f32 %v1100, %v1101
    %v1103 = vrot.slane %v1102, 1
    %v1104 = vadd.f32 %v1102, %v1103
    %v1105 = vsel %vm279, %v1094, 0.0
    %v1106 = vsel %vm279, %v1095, 0.0
    %v1107 = vadd.f32 %v1105, %v1106
    %v1108 = vrot.slane %v1107, 4
    %v1109 = vadd.f32 %v1107, %v1108
    %v1110 = vrot.slane %v1109, 2
    %v1111 = vadd.f32 %v1109, %v1110
    %v1112 = vrot.slane %v1111, 1
    %v1113 = vadd.f32 %v1111, %v1112
    %s1114 = scalar_lea.vmem [#allocation6], 64
    %v1115 = vld [vmem:[%s1114] sm:$0xff]
    %v1116 = vld [vmem:[%s1114 + $0x8] sm:$0xff]
    %v1117 = vld [vmem:[%s1114 + $0x80] sm:$0xff]
    %v1118 = vld [vmem:[%s1114 + $0x88] sm:$0xff]
    %v1119 = vmul.f32 %v1115, %v1066
    %v1120 = vmul.f32 %v1116, %v1067
    %v1121 = vmul.f32 %v1117, %v1068
    %v1122 = vmul.f32 %v1118, %v1069
    %v1123 = vlaneseq
    %v1124 = vshrl.u32 %v1123, 7
    %v1125 = vsub.s32 4, %v1124
    %v1126 = vrot.slane %v743, %v1125
    %1128 = vbcast.lane.b32.xlu0 %v1126, 256
    %v1129 = vpop.permute.xlu0 %1128
    %s1131 = sor.u32 256, 8
    %1132 = vbcast.lane.b32.xlu0 %v1126, %s1131
    %v1133 = vpop.permute.xlu0 %1132
    %v1134 = vlaneseq
    %v1135 = vshrl.u32 %v1134, 7
    %v1136 = vsub.s32 4, %v1135
    %v1137 = vrot.slane %v744, %v1136
    %1139 = vbcast.lane.b32.xlu0 %v1137, 256
    %v1140 = vpop.permute.xlu0 %1139
    %s1142 = sor.u32 256, 8
    %1143 = vbcast.lane.b32.xlu0 %v1137, %s1142
    %v1144 = vpop.permute.xlu0 %1143
    %v1145 = vlaneseq
    %v1146 = vshrl.u32 %v1145, 7
    %v1147 = vsub.s32 4, %v1146
    %v1148 = vrot.slane %v741, %v1147
    %v1149 = vlaneseq
    %v1150 = vshrl.u32 %v1149, 7
    %v1151 = vsub.s32 4, %v1150
    %v1152 = vrot.slane %v742, %v1151
    %v1153 = vmul.f32 %v1129, %v1148
    %v1154 = vmul.f32 %v1133, %v1148
    %v1155 = vmul.f32 %v1140, %v1152
    %v1156 = vmul.f32 %v1144, %v1152
    %v1157 = vadd.f32 %v1119, %v1153
    %v1158 = vadd.f32 %v1120, %v1154
    %v1159 = vadd.f32 %v1121, %v1155
    %v1160 = vadd.f32 %v1122, %v1156
    %v1161 = vlaneseq
    %v1162 = vshrl.u32 %v1161, 7
    %v1163 = vsub.s32 4, %v1162
    %v1164 = vrot.slane %v745, %v1163
    %1166 = vbcast.lane.b32.xlu0 %v1164, 256
    %v1167 = vpop.permute.xlu0 %1166
    %s1169 = sor.u32 256, 8
    %1170 = vbcast.lane.b32.xlu0 %v1164, %s1169
    %v1171 = vpop.permute.xlu0 %1170
    %v1172 = vlaneseq
    %v1173 = vshrl.u32 %v1172, 7
    %v1174 = vsub.s32 4, %v1173
    %v1175 = vrot.slane %v746, %v1174
    %1177 = vbcast.lane.b32.xlu0 %v1175, 256
    %v1178 = vpop.permute.xlu0 %1177
    %s1180 = sor.u32 256, 8
    %1181 = vbcast.lane.b32.xlu0 %v1175, %s1180
    %v1182 = vpop.permute.xlu0 %1181
    %v1183 = vmul.f32 %v1157, %v1167
    %v1184 = vmul.f32 %v1158, %v1171
    %v1185 = vmul.f32 %v1159, %v1178
    %v1186 = vmul.f32 %v1160, %v1182
    %v1187 = vsel %vm279, %v1183, 0.0
    %v1188 = vsel %vm279, %v1184, 0.0
    %v1189 = vadd.f32 %v1187, %v1188
    %v1190 = vrot.slane %v1189, 4
    %v1191 = vadd.f32 %v1189, %v1190
    %v1192 = vrot.slane %v1191, 2
    %v1193 = vadd.f32 %v1191, %v1192
    %v1194 = vrot.slane %v1193, 1
    %v1195 = vadd.f32 %v1193, %v1194
    %v1196 = vsel %vm279, %v1185, 0.0
    %v1197 = vsel %vm279, %v1186, 0.0
    %v1198 = vadd.f32 %v1196, %v1197
    %v1199 = vrot.slane %v1198, 4
    %v1200 = vadd.f32 %v1198, %v1199
    %v1201 = vrot.slane %v1200, 2
    %v1202 = vadd.f32 %v1200, %v1201
    %v1203 = vrot.slane %v1202, 1
    %v1204 = vadd.f32 %v1202, %v1203
    %s1205 = scalar_lea.vmem [#allocation6], 80
    %v1206 = vld [vmem:[%s1205] sm:$0xff]
    %v1207 = vld [vmem:[%s1205 + $0x8] sm:$0xff]
    %v1208 = vld [vmem:[%s1205 + $0x80] sm:$0xff]
    %v1209 = vld [vmem:[%s1205 + $0x88] sm:$0xff]
    %v1210 = vmul.f32 %v1206, %v1157
    %v1211 = vmul.f32 %v1207, %v1158
    %v1212 = vmul.f32 %v1208, %v1159
    %v1213 = vmul.f32 %v1209, %v1160
    %v1214 = vlaneseq
    %v1215 = vshrl.u32 %v1214, 7
    %v1216 = vsub.s32 5, %v1215
    %v1217 = vrot.slane %v743, %v1216
    %1219 = vbcast.lane.b32.xlu0 %v1217, 256
    %v1220 = vpop.permute.xlu0 %1219
    %s1222 = sor.u32 256, 8
    %1223 = vbcast.lane.b32.xlu0 %v1217, %s1222
    %v1224 = vpop.permute.xlu0 %1223
    %v1225 = vlaneseq
    %v1226 = vshrl.u32 %v1225, 7
    %v1227 = vsub.s32 5, %v1226
    %v1228 = vrot.slane %v744, %v1227
    %1230 = vbcast.lane.b32.xlu0 %v1228, 256
    %v1231 = vpop.permute.xlu0 %1230
    %s1233 = sor.u32 256, 8
    %1234 = vbcast.lane.b32.xlu0 %v1228, %s1233
    %v1235 = vpop.permute.xlu0 %1234
    %v1236 = vlaneseq
    %v1237 = vshrl.u32 %v1236, 7
    %v1238 = vsub.s32 5, %v1237
    %v1239 = vrot.slane %v741, %v1238
    %v1240 = vlaneseq
    %v1241 = vshrl.u32 %v1240, 7
    %v1242 = vsub.s32 5, %v1241
    %v1243 = vrot.slane %v742, %v1242
    %v1244 = vmul.f32 %v1220, %v1239
    %v1245 = vmul.f32 %v1224, %v1239
    %v1246 = vmul.f32 %v1231, %v1243
    %v1247 = vmul.f32 %v1235, %v1243
    %v1248 = vadd.f32 %v1210, %v1244
    %v1249 = vadd.f32 %v1211, %v1245
    %v1250 = vadd.f32 %v1212, %v1246
    %v1251 = vadd.f32 %v1213, %v1247
    %v1252 = vlaneseq
    %v1253 = vshrl.u32 %v1252, 7
    %v1254 = vsub.s32 5, %v1253
    %v1255 = vrot.slane %v745, %v1254
    %1257 = vbcast.lane.b32.xlu0 %v1255, 256
    %v1258 = vpop.permute.xlu0 %1257
    %s1260 = sor.u32 256, 8
    %1261 = vbcast.lane.b32.xlu0 %v1255, %s1260
    %v1262 = vpop.permute.xlu0 %1261
    %v1263 = vlaneseq
    %v1264 = vshrl.u32 %v1263, 7
    %v1265 = vsub.s32 5, %v1264
    %v1266 = vrot.slane %v746, %v1265
    %1268 = vbcast.lane.b32.xlu0 %v1266, 256
    %v1269 = vpop.permute.xlu0 %1268
    %s1271 = sor.u32 256, 8
    %1272 = vbcast.lane.b32.xlu0 %v1266, %s1271
    %v1273 = vpop.permute.xlu0 %1272
    %v1274 = vmul.f32 %v1248, %v1258
    %v1275 = vmul.f32 %v1249, %v1262
    %v1276 = vmul.f32 %v1250, %v1269
    %v1277 = vmul.f32 %v1251, %v1273
    %v1278 = vsel %vm279, %v1274, 0.0
    %v1279 = vsel %vm279, %v1275, 0.0
    %v1280 = vadd.f32 %v1278, %v1279
    %v1281 = vrot.slane %v1280, 4
    %v1282 = vadd.f32 %v1280, %v1281
    %v1283 = vrot.slane %v1282, 2
    %v1284 = vadd.f32 %v1282, %v1283
    %v1285 = vrot.slane %v1284, 1
    %v1286 = vadd.f32 %v1284, %v1285
    %v1287 = vsel %vm279, %v1276, 0.0
    %v1288 = vsel %vm279, %v1277, 0.0
    %v1289 = vadd.f32 %v1287, %v1288
    %v1290 = vrot.slane %v1289, 4
    %v1291 = vadd.f32 %v1289, %v1290
    %v1292 = vrot.slane %v1291, 2
    %v1293 = vadd.f32 %v1291, %v1292
    %v1294 = vrot.slane %v1293, 1
    %v1295 = vadd.f32 %v1293, %v1294
    %s1296 = scalar_lea.vmem [#allocation6], 96
    %v1297 = vld [vmem:[%s1296] sm:$0xff]
    %v1298 = vld [vmem:[%s1296 + $0x8] sm:$0xff]
    %v1299 = vld [vmem:[%s1296 + $0x80] sm:$0xff]
    %v1300 = vld [vmem:[%s1296 + $0x88] sm:$0xff]
    %v1301 = vmul.f32 %v1297, %v1248
    %v1302 = vmul.f32 %v1298, %v1249
    %v1303 = vmul.f32 %v1299, %v1250
    %v1304 = vmul.f32 %v1300, %v1251
    %v1305 = vlaneseq
    %v1306 = vshrl.u32 %v1305, 7
    %v1307 = vsub.s32 6, %v1306
    %v1308 = vrot.slane %v743, %v1307
    %1310 = vbcast.lane.b32.xlu0 %v1308, 256
    %v1311 = vpop.permute.xlu0 %1310
    %s1313 = sor.u32 256, 8
    %1314 = vbcast.lane.b32.xlu0 %v1308, %s1313
    %v1315 = vpop.permute.xlu0 %1314
    %v1316 = vlaneseq
    %v1317 = vshrl.u32 %v1316, 7
    %v1318 = vsub.s32 6, %v1317
    %v1319 = vrot.slane %v744, %v1318
    %1321 = vbcast.lane.b32.xlu0 %v1319, 256
    %v1322 = vpop.permute.xlu0 %1321
    %s1324 = sor.u32 256, 8
    %1325 = vbcast.lane.b32.xlu0 %v1319, %s1324
    %v1326 = vpop.permute.xlu0 %1325
    %v1327 = vlaneseq
    %v1328 = vshrl.u32 %v1327, 7
    %v1329 = vsub.s32 6, %v1328
    %v1330 = vrot.slane %v741, %v1329
    %v1331 = vlaneseq
    %v1332 = vshrl.u32 %v1331, 7
    %v1333 = vsub.s32 6, %v1332
    %v1334 = vrot.slane %v742, %v1333
    %v1335 = vmul.f32 %v1311, %v1330
    %v1336 = vmul.f32 %v1315, %v1330
    %v1337 = vmul.f32 %v1322, %v1334
    %v1338 = vmul.f32 %v1326, %v1334
    %v1339 = vadd.f32 %v1301, %v1335
    %v1340 = vadd.f32 %v1302, %v1336
    %v1341 = vadd.f32 %v1303, %v1337
    %v1342 = vadd.f32 %v1304, %v1338
    %v1343 = vlaneseq
    %v1344 = vshrl.u32 %v1343, 7
    %v1345 = vsub.s32 6, %v1344
    %v1346 = vrot.slane %v745, %v1345
    %1348 = vbcast.lane.b32.xlu0 %v1346, 256
    %v1349 = vpop.permute.xlu0 %1348
    %s1351 = sor.u32 256, 8
    %1352 = vbcast.lane.b32.xlu0 %v1346, %s1351
    %v1353 = vpop.permute.xlu0 %1352
    %v1354 = vlaneseq
    %v1355 = vshrl.u32 %v1354, 7
    %v1356 = vsub.s32 6, %v1355
    %v1357 = vrot.slane %v746, %v1356
    %1359 = vbcast.lane.b32.xlu0 %v1357, 256
    %v1360 = vpop.permute.xlu0 %1359
    %s1362 = sor.u32 256, 8
    %1363 = vbcast.lane.b32.xlu0 %v1357, %s1362
    %v1364 = vpop.permute.xlu0 %1363
    %v1365 = vmul.f32 %v1339, %v1349
    %v1366 = vmul.f32 %v1340, %v1353
    %v1367 = vmul.f32 %v1341, %v1360
    %v1368 = vmul.f32 %v1342, %v1364
    %v1369 = vsel %vm279, %v1365, 0.0
    %v1370 = vsel %vm279, %v1366, 0.0
    %v1371 = vadd.f32 %v1369, %v1370
    %v1372 = vrot.slane %v1371, 4
    %v1373 = vadd.f32 %v1371, %v1372
    %v1374 = vrot.slane %v1373, 2
    %v1375 = vadd.f32 %v1373, %v1374
    %v1376 = vrot.slane %v1375, 1
    %v1377 = vadd.f32 %v1375, %v1376
    %v1378 = vsel %vm279, %v1367, 0.0
    %v1379 = vsel %vm279, %v1368, 0.0
    %v1380 = vadd.f32 %v1378, %v1379
    %v1381 = vrot.slane %v1380, 4
    %v1382 = vadd.f32 %v1380, %v1381
    %v1383 = vrot.slane %v1382, 2
    %v1384 = vadd.f32 %v1382, %v1383
    %v1385 = vrot.slane %v1384, 1
    %v1386 = vadd.f32 %v1384, %v1385
    %s1387 = scalar_lea.vmem [#allocation6], 112
    %v1388 = vld [vmem:[%s1387] sm:$0xff]
    %v1389 = vld [vmem:[%s1387 + $0x8] sm:$0xff]
    %v1390 = vld [vmem:[%s1387 + $0x80] sm:$0xff]
    %v1391 = vld [vmem:[%s1387 + $0x88] sm:$0xff]
    %v1392 = vmul.f32 %v1388, %v1339
    %v1393 = vmul.f32 %v1389, %v1340
    %v1394 = vmul.f32 %v1390, %v1341
    %v1395 = vmul.f32 %v1391, %v1342
    %v1396 = vlaneseq
    %v1397 = vshrl.u32 %v1396, 7
    %v1398 = vsub.s32 7, %v1397
    %v1399 = vrot.slane %v743, %v1398
    %1401 = vbcast.lane.b32.xlu0 %v1399, 256
    %v1402 = vpop.permute.xlu0 %1401
    %s1404 = sor.u32 256, 8
    %1405 = vbcast.lane.b32.xlu0 %v1399, %s1404
    %v1406 = vpop.permute.xlu0 %1405
    %v1407 = vlaneseq
    %v1408 = vshrl.u32 %v1407, 7
    %v1409 = vsub.s32 7, %v1408
    %v1410 = vrot.slane %v744, %v1409
    %1412 = vbcast.lane.b32.xlu0 %v1410, 256
    %v1413 = vpop.permute.xlu0 %1412
    %s1415 = sor.u32 256, 8
    %1416 = vbcast.lane.b32.xlu0 %v1410, %s1415
    %v1417 = vpop.permute.xlu0 %1416
    %v1418 = vlaneseq
    %v1419 = vshrl.u32 %v1418, 7
    %v1420 = vsub.s32 7, %v1419
    %v1421 = vrot.slane %v741, %v1420
    %v1422 = vlaneseq
    %v1423 = vshrl.u32 %v1422, 7
    %v1424 = vsub.s32 7, %v1423
    %v1425 = vrot.slane %v742, %v1424
    %v1426 = vmul.f32 %v1402, %v1421
    %v1427 = vmul.f32 %v1406, %v1421
    %v1428 = vmul.f32 %v1413, %v1425
    %v1429 = vmul.f32 %v1417, %v1425
    %v1430 = vadd.f32 %v1392, %v1426
    %v1431 = vadd.f32 %v1393, %v1427
    %v1432 = vadd.f32 %v1394, %v1428
    %v1433 = vadd.f32 %v1395, %v1429
    %v1434 = vlaneseq
    %v1435 = vshrl.u32 %v1434, 7
    %v1436 = vsub.s32 7, %v1435
    %v1437 = vrot.slane %v745, %v1436
    %1439 = vbcast.lane.b32.xlu0 %v1437, 256
    %v1440 = vpop.permute.xlu0 %1439
    %s1442 = sor.u32 256, 8
    %1443 = vbcast.lane.b32.xlu0 %v1437, %s1442
    %v1444 = vpop.permute.xlu0 %1443
    %v1445 = vlaneseq
    %v1446 = vshrl.u32 %v1445, 7
    %v1447 = vsub.s32 7, %v1446
    %v1448 = vrot.slane %v746, %v1447
    %1450 = vbcast.lane.b32.xlu0 %v1448, 256
    %v1451 = vpop.permute.xlu0 %1450
    %s1453 = sor.u32 256, 8
    %1454 = vbcast.lane.b32.xlu0 %v1448, %s1453
    %v1455 = vpop.permute.xlu0 %1454
    %v1456 = vmul.f32 %v1430, %v1440
    %v1457 = vmul.f32 %v1431, %v1444
    %v1458 = vmul.f32 %v1432, %v1451
    %v1459 = vmul.f32 %v1433, %v1455
    %v1460 = vsel %vm279, %v1456, 0.0
    %v1461 = vsel %vm279, %v1457, 0.0
    %v1462 = vadd.f32 %v1460, %v1461
    %v1463 = vrot.slane %v1462, 4
    %v1464 = vadd.f32 %v1462, %v1463
    %v1465 = vrot.slane %v1464, 2
    %v1466 = vadd.f32 %v1464, %v1465
    %v1467 = vrot.slane %v1466, 1
    %v1468 = vadd.f32 %v1466, %v1467
    %v1469 = vsel %vm279, %v1458, 0.0
    %v1470 = vsel %vm279, %v1459, 0.0
    %v1471 = vadd.f32 %v1469, %v1470
    %v1472 = vrot.slane %v1471, 4
    %v1473 = vadd.f32 %v1471, %v1472
    %v1474 = vrot.slane %v1473, 2
    %v1475 = vadd.f32 %v1473, %v1474
    %v1476 = vrot.slane %v1475, 1
    %v1477 = vadd.f32 %v1475, %v1476
    %1478 = vst.msk [vmem:[#allocation8] sm:$0xff] %vm279, %v1430
    %1479 = vst.msk [vmem:[#allocation8 + $0x8] sm:$0xff] %vm279, %v1431
    %1480 = vst.msk [vmem:[#allocation8 + $0x10] sm:$0xff] %vm279, %v1432
    %1481 = vst.msk [vmem:[#allocation8 + $0x18] sm:$0xff] %vm279, %v1433
    %v1482 = vsel %vm337, %v831, %v922
    %v1483 = vsel %vm337, %v840, %v931
    %vm1484 = vcmask 1041408
    %v1485 = vsel %vm1484, %v1482, %v1013
    %v1486 = vsel %vm1484, %v1483, %v1022
    %v1487 = vsel %vm137, %v1485, %v1104
    %v1488 = vsel %vm137, %v1486, %v1113
    %vm1489 = vcmask 1043456
    %v1490 = vsel %vm1489, %v1487, %v1195
    %v1491 = vsel %vm1489, %v1488, %v1204
    %v1492 = vsel %vm213, %v1490, %v1286
    %v1493 = vsel %vm213, %v1491, %v1295
    %v1494 = vsel %vm190, %v1492, %v1377
    %v1495 = vsel %vm190, %v1493, %v1386
    %v1496 = vsel %vm167, %v1494, %v1468
    %v1497 = vsel %vm167, %v1495, %v1477
    %1498 = vst.msk [vmem:[#allocation7] sm:$0xff] %vm279, %v1496
    %1499 = vst.msk [vmem:[#allocation7 + $0x8] sm:$0xff] %vm279, %v1497
    %v1500 = vld [vmem:[#allocation7] sm:$0xff]
    %v1501 = vld [vmem:[#allocation7 + $0x8] sm:$0xff]
    %v1502 = vld [vmem:[%s9] sm:$0x1]
    %v1504 = vlaneseq
    %v1505 = vshrl.u32 %v1504, 7
    %v1506 = vsub.s32 0, %v1505
    %v1507 = vrot.slane %v1502, %v1506
    %v1509 = vmul.f32 %v1507, %v244
    %v1510 = vmul.f32 %v1507, %v245
    %v1511 = vadd.f32 %v1500, %v1509
    %v1512 = vadd.f32 %v1501, %v1510
    %v1513 = vand.u32 2147483647, %v124
    %v1514 = vand.u32 2147483647, %v127
    %v1515 = vsub.f32 0.0, %v1513
    %v1516 = vsub.f32 0.0, %v1514
    %v1517 = vmul.f32 %v1515, 1.442695
    %v1518 = vpow.pop %v1517
    %v1519 = vmul.f32 %v1516, 1.442695
    %v1520 = vpow.pop %v1519
    %vm1521 = vcmp.ge.f32.partialorder %v124, 0.0
    %vm1522 = vcmp.ge.f32.partialorder %v127, 0.0
    %v1523 = vadd.f32 %v1518, 1.0
    %v1524 = vadd.f32 %v1520, 1.0
    %v1525 = vrcp.pop %v1523
    %v1526 = vmul.f32 1.0, %v1525
    %v1527 = vrcp.pop %v1524
    %v1528 = vmul.f32 1.0, %v1527
    %v1529 = vmul.f32 %v1518, %v1525
    %v1530 = vmul.f32 %v1520, %v1527
    %v1531 = vsel %vm1521, %v1526, %v1529
    %v1532 = vsel %vm1522, %v1528, %v1530
    %v1533 = vmul.f32 %v124, %v1531
    %v1534 = vmul.f32 %v127, %v1532
    %1537 = vrot.lane.b32.xlu0 %v1533, 64
    %v1538 = vpop.permute.xlu0 %1537
    %1539 = vrot.lane.b32.xlu0 %v1534, 64
    %v1540 = vpop.permute.xlu0 %1539
    %v1543 = vmul.f32 %v1511, %v1538
    %v1544 = vmul.f32 %v1512, %v1540
    %v1545 = vpack.c.bf16 %v1544, %v1543
    %v1546 = vld [vmem:[%s10] sm:$0xf]
    %v1547 = vld [vmem:[%s10 + $0x4] sm:$0xf]
    %v1548 = vld [vmem:[%s10 + $0x8] sm:$0xf]
    %v1549 = vld [vmem:[%s10 + $0xc] sm:$0xf]
    %v1550 = vld [vmem:[%s10 + $0x10] sm:$0xf]
    %v1551 = vld [vmem:[%s10 + $0x14] sm:$0xf]
    %v1552 = vld [vmem:[%s10 + $0x18] sm:$0xf]
    %v1553 = vld [vmem:[%s10 + $0x1c] sm:$0xf]
    %v1562 = vunpack.c.l.b16 %v1546
    %v1563 = vunpack.c.l.b16 %v1547
    %v1564 = vunpack.c.l.b16 %v1548
    %v1565 = vunpack.c.l.b16 %v1549
    %v1566 = vunpack.c.l.b16 %v1550
    %v1567 = vunpack.c.l.b16 %v1551
    %v1568 = vunpack.c.l.b16 %v1552
    %v1569 = vunpack.c.l.b16 %v1553
    %v1570 = vpack.c.b16 %v1563, %v1562
    %v1571 = vpack.c.b16 %v1565, %v1564
    %v1572 = vpack.c.b16 %v1567, %v1566
    %v1573 = vpack.c.b16 %v1569, %v1568
    %v1579 = vsel %vm279, %v1545, 0
    %1581 = vmatprep.subr.bf16.mxu0 0
    %1582 = vmatpush1.bf16.msra.mxu0 0
    %1583 = vmatprep.subr.bf16.mxu0 0
    %1584 = vmatpush1.bf16.msra.mxu0 0
    %1585 = vmatprep.subr.bf16.mxu0 0
    %1586 = vmatpush1.bf16.msra.mxu0 0
    %1587 = vmatprep.subr.bf16.mxu0 0
    %1588 = vmatpush1.bf16.msra.mxu0 0
    %1589 = vmatprep.subr.bf16.mxu0 0
    %1590 = vmatpush1.bf16.msra.mxu0 %v1573
    %1591 = vmatprep.subr.bf16.mxu0 0
    %1592 = vmatpush1.bf16.msra.mxu0 %v1572
    %1593 = vmatprep.subr.bf16.mxu0 0
    %1594 = vmatpush1.bf16.msra.mxu0 %v1571
    %1595 = vmatprep.subr.bf16.mxu0 0
    %1596 = vmatpush1.bf16.msra.mxu0 %v1570
    %1597 = vmatprep.subr.bf16.mxu0 0
    %1598 = vmatpush2.bf16.msra.mxu0 0
    %1599 = vmatprep.subr.bf16.mxu0 0
    %1600 = vmatpush2.bf16.msra.mxu0 0
    %1601 = vmatprep.subr.bf16.mxu0 0
    %1602 = vmatpush2.bf16.msra.mxu0 0
    %1603 = vmatprep.subr.bf16.mxu0 0
    %1604 = vmatpush2.bf16.msra.mxu0 0
    %1605 = vmatprep.subr.bf16.mxu0 0
    %1606 = vmatpush2.bf16.msra.mxu0 0
    %1607 = vmatprep.subr.bf16.mxu0 0
    %1608 = vmatpush2.bf16.msra.mxu0 0
    %1609 = vmatprep.subr.bf16.mxu0 0
    %1610 = vmatpush2.bf16.msra.mxu0 0
    %1611 = vmatprep.subr.bf16.mxu0 0
    %1612 = vmatpush2.bf16.msra.mxu0 0
    %1613 = vmatprep.mubr.bf16.mxu0 0
    %1614 = vmatmul.mubr.bf16.gmra.mxu0 %v1579
    %v1615 = vpop.f32.mrf.mxu0
    %v1616 = vadd.f32 0.0, %v1615
    %v1617 = vpop.f32.mrf.mxu0
    %v1618 = vpop.f32.mrf.mxu0
    %v1619 = vadd.f32 0.0, %v1618
    %v1620 = vpop.f32.mrf.mxu0
    %1621 = vdwg.mxu0
    %v1622 = vadd.f32 %v40, %v1616
    %v1623 = vadd.f32 %v41, %v1619
    %1624 = vst.msk [vmem:[#allocation9] sm:$0xff] %vm44, %v1622
    %1625 = vst.msk [vmem:[#allocation9 + $0x8] sm:$0xff] %vm44, %v1623
    // Predicated region
    $region46: #{tpu_custom_call.1} parent=1 // pred_check
      _
    $region47: #{tpu_custom_call.1} parent=1 // pred_check_branch
      %1627 = sbr.rel (0) target = $region49
    $region48: #{tpu_custom_call.1} parent=1 // pred_region
      %s1629 = ssub.s32 256, 256
      %1630 = vsyncadd [#allocation10], %s1629
      %s1631 = sshll.u32 [#allocation9], 4
      %s1632 = int_to_ptr.vmem [resolvable:$true] %s1631
      %1637 = dma.vmem_to_hbm [thread:$0]  %s1632, 256, %s11, [#allocation10], 128, 128, 8
    $region49: #{tpu_custom_call.1} parent=1 // pred_fallthru
      _
    // Predicated region
    $region50: #{tpu_custom_call.1} parent=1 // pred_check
      _
    $region51: #{tpu_custom_call.1} parent=1 // pred_check_branch
      %1639 = sbr.rel (0) target = $region53
    $region52: #{tpu_custom_call.1} parent=1 // pred_region
      %1640 = dma.done [#allocation10], 256
    $region53: #{tpu_custom_call.1} parent=1 // pred_fallthru
      _
    %1641 = vsyncpa [#allocation10], 1

</llo_original>
